<compile_context>
chip_gen: v6e
topology: v6e:2x2x1
jax: 0.10.0
libtpu: 0.0.40
codegen_flags: <defaults>
</compile_context>

<pallas_src>
import functools

import jax
import jax.numpy as jnp
from jax import lax
from jax.experimental import pallas as pl
from jax.experimental.pallas import tpu as pltpu


# ------------------------------- Pallas kernel ------------------------------

def _center_attention_kernel(xw_ref, wq_ref, bq_ref, wkv_ref, bkv_ref,
                             wo_ref, bo_ref, out_ref, kv_ref, *,
                             num_heads, head_ch, kernel_size, W, N, TN, halo):
    """Fused projection + kxk neighborhood attention for one (batch, row-tile).

    xw_ref:  (C, LW)   bf16  halo'd, zero-row-padded window of x (channel-first)
    wq_ref:  (C, C)    bf16  q projection, transposed, scale pre-folded
    bq_ref:  (C, 1)    f32   scaled q bias
    wkv_ref: (2C, C)   bf16  kv projection, transposed
    bkv_ref: (2C, 1)   f32
    wo_ref:  (C, C)    bf16  output projection, transposed
    bo_ref:  (C, 1)    f32
    out_ref: (C, TN)   f32   this tile's output (channel-first, lane-dense)
    kv_ref:  (2C, LW)  f32   VMEM scratch for this tile's K/V window
    """
    C = num_heads * head_ch
    k = kernel_size
    p = k // 2
    LW = TN + 2 * halo
    f32 = jnp.float32
    t = pl.program_id(1)

    # ---- K/V projection over the halo'd window (bf16 MXU, f32 accumulate) ---
    kv = jnp.dot(wkv_ref[...], xw_ref[...], preferred_element_type=f32)  # (2C, LW)
    # Add the bias only on real in-image tokens: padded tokens keep K = V = 0,
    # matching the reference's ZeroPad2d applied AFTER the kv projection.
    g = t * TN + lax.broadcasted_iota(jnp.int32, (1, LW), 1) - halo
    valid = jnp.logical_and(g >= 0, g < N).astype(f32)                   # (1, LW)
    kv_ref[...] = kv + bkv_ref[...].astype(f32) * valid

    # ---- q projection for this tile's own tokens (scale folded into wq) -----
    xq = xw_ref[:, halo:halo + TN]                                       # (C, TN)
    q = jnp.dot(wq_ref[...], xq, preferred_element_type=f32) + bq_ref[...].astype(f32)
    q3 = q.reshape(num_heads, head_ch, TN)

    # ---- column-validity masks, one per horizontal offset dj (in-kernel) ----
    col = lax.broadcasted_iota(jnp.int32, (1, TN), 1) % W
    cmasks = []
    for dj in range(k):
        if dj == p:
            cmasks.append(None)                       # center column: always valid
        else:
            d = dj - p
            cmasks.append(
                jnp.logical_and(col + d >= 0, col + d < W).astype(f32))  # (1, TN)

    offsets = [(di, dj) for di in range(k) for dj in range(k)]

    # ---- logits: ONE misaligned K slice per offset, all heads at once -------
    s_list = []
    for (di, dj) in offsets:
        o = (di - p) * W + (dj - p)
        k_nb = kv_ref[:C, halo + o:halo + o + TN]                        # (C, TN)
        s_j = jnp.sum(q3 * k_nb.reshape(num_heads, head_ch, TN), axis=1)  # (nh, TN)
        if cmasks[dj] is not None:
            s_j = s_j * cmasks[dj]                    # wrapped column -> logit 0
        s_list.append(s_j)

    # ---- softmax over the k*k neighbors (zero logits included, as reference) -
    m = s_list[0]
    for s_j in s_list[1:]:
        m = jnp.maximum(m, s_j)
    e_list = [jnp.exp(s_j - m) for s_j in s_list]
    den = e_list[0]
    for e_j in e_list[1:]:
        den = den + e_j
    inv = pl.reciprocal(den, approx=True)                                # (nh, TN)

    # ---- weighted sum of values: ONE misaligned V slice per offset ----------
    acc = jnp.zeros((num_heads, head_ch, TN), f32)
    for j, (di, dj) in enumerate(offsets):
        o = (di - p) * W + (dj - p)
        v_nb = kv_ref[C:, halo + o:halo + o + TN]                        # (C, TN)
        w_j = e_list[j] * inv
        if cmasks[dj] is not None:
            w_j = w_j * cmasks[dj]                    # wrapped column -> weight 0
        acc = acc + w_j[:, None, :] * v_nb.reshape(num_heads, head_ch, TN)
    attn = acc.reshape(C, TN)

    # ---- output projection (bf16 MXU) + lane-dense store --------------------
    out = jnp.dot(wo_ref[...], attn.astype(jnp.bfloat16),
                  preferred_element_type=f32) + bo_ref[...].astype(f32)
    out_ref[...] = out.astype(out_ref.dtype)


# ------------------------------- module glue --------------------------------

def _pick_tile_rows(H, W, max_tile_tokens):
    """Largest divisor TH of H with TH*W a multiple of 128 and <= budget."""
    best = None
    for th in range(1, H + 1):
        if H % th:
            continue
        tn = th * W
        if tn % 128 == 0 and tn <= max_tile_tokens:
            best = th
    return best if best is not None else H


def center_attention_forward(x, H, W, params, *, num_heads, kernel_size=3,
                             max_tile_tokens=512):
    """Pallas implementation of CenterAttention.forward (stride=1, padded)."""
    B, N, C = x.shape
    assert N == H * W and C % num_heads == 0
    assert kernel_size % 2 == 1, "only odd kernel_size supported"
    hc = C // num_heads
    p = kernel_size // 2
    scale = float(hc) ** (-0.5)

    TH = _pick_tile_rows(H, W, max_tile_tokens)
    n_tiles = H // TH
    TN = TH * W
    halo = p * W + p                 # max |flattened-token shift| of a neighbor
    LW = TN + 2 * halo               # halo'd window width per tile

    f32, bf16 = jnp.float32, jnp.bfloat16

    # Host-side weight prep: transpose for standard (M,K)@(K,N) form, fold the
    # attention scale into the q weights/bias, cast the matmul inputs to bf16.
    wq_t = jnp.asarray(params["wq"] * scale).T.astype(bf16)        # (C, C)
    bq = jnp.asarray(params["bq"] * scale).reshape(C, 1).astype(f32)
    wkv_t = jnp.asarray(params["wkv"]).T.astype(bf16)              # (2C, C)
    bkv = jnp.asarray(params["bkv"]).reshape(2 * C, 1).astype(f32)
    wo_t = jnp.asarray(params["wo"]).T.astype(bf16)                # (C, C)
    bo = jnp.asarray(params["bo"]).reshape(C, 1).astype(f32)

    # Channel-first x, zero-padded by `halo` flattened tokens on both ends,
    # sliced into overlapping per-tile windows (layout plumbing outside the
    # kernel; ~+2p/TH extra x bytes, removes all dynamic lane addressing).
    x_cf = jnp.transpose(x, (0, 2, 1)).astype(bf16)                # (B, C, N)
    x_flat_pad = jnp.pad(x_cf, ((0, 0), (0, 0), (halo, halo)))
    x_win = jnp.stack(
        [x_flat_pad[:, :, t * TN:t * TN + LW] for t in range(n_tiles)],
        axis=1)                                                    # (B, n_tiles, C, LW)

    kernel = functools.partial(
        _center_attention_kernel, num_heads=num_heads, head_ch=hc,
        kernel_size=kernel_size, W=W, N=N, TN=TN, halo=halo)

    out_cf = pl.pallas_call(
        kernel,
        out_shape=jax.ShapeDtypeStruct((B, C, N), f32),
        grid_spec=pltpu.PrefetchScalarGridSpec(
            num_scalar_prefetch=0,
            grid=(B, n_tiles),
            in_specs=[
                pl.BlockSpec((None, None, C, LW), lambda b, t: (b, t, 0, 0)),  # x_win
                pl.BlockSpec((C, C), lambda b, t: (0, 0)),                     # wq^T
                pl.BlockSpec((C, 1), lambda b, t: (0, 0)),                     # bq
                pl.BlockSpec((2 * C, C), lambda b, t: (0, 0)),                 # wkv^T
                pl.BlockSpec((2 * C, 1), lambda b, t: (0, 0)),                 # bkv
                pl.BlockSpec((C, C), lambda b, t: (0, 0)),                     # wo^T
                pl.BlockSpec((C, 1), lambda b, t: (0, 0)),                     # bo
            ],
            out_specs=pl.BlockSpec((None, C, TN), lambda b, t: (b, 0, t)),
            scratch_shapes=[pltpu.VMEM((2 * C, LW), jnp.float32)],
        ),
        compiler_params=pltpu.CompilerParams(
            dimension_semantics=("parallel", "parallel"),
            vmem_limit_bytes=32 * 1024 * 1024,
        ),
    )(x_win, wq_t, bq, wkv_t, bkv, wo_t, bo)

    return jnp.transpose(out_cf, (0, 2, 1)).astype(x.dtype)


# --------------------------- plain-JAX reference ----------------------------

def reference_forward(x, H, W, params, *, num_heads, kernel_size=3):
    B, N, C = x.shape
    hc = C // num_heads
    K2 = kernel_size * kernel_size
    pad = kernel_size // 2
    scale = float(hc) ** (-0.5)

    q = x @ params["wq"] + params["bq"]
    kv = x @ params["wkv"] + params["bkv"]
    k_map = kv[..., :C].reshape(B, H, W, num_heads, hc)
    v_map = kv[..., C:].reshape(B, H, W, num_heads, hc)
    pad_cfg = ((0, 0), (pad, pad), (pad, pad), (0, 0), (0, 0))
    k_pad = jnp.pad(k_map, pad_cfg)
    v_pad = jnp.pad(v_map, pad_cfg)

    def unfold(padded):
        patches = [padded[:, di:di + H, dj:dj + W]
                   for di in range(kernel_size) for dj in range(kernel_size)]
        p = jnp.stack(patches, axis=3)
        return p.transpose(0, 4, 1, 2, 3, 5).reshape(B, num_heads, N, K2, hc)

    k_unf = unfold(k_pad)
    v_unf = unfold(v_pad)
    qh = (q.reshape(B, H, W, num_heads, hc).transpose(0, 3, 1, 2, 4)
           .reshape(B, num_heads, N, hc)) * scale
    s = jnp.einsum("bhnd,bhnkd->bhnk", qh, k_unf)
    p = jax.nn.softmax(s, axis=-1)
    o = jnp.einsum("bhnk,bhnkd->bhnd", p, v_unf)
    o = o.transpose(0, 2, 1, 3).reshape(B, N, C)
    return o @ params["wo"] + params["bo"]


# ----------------------------------- main ------------------------------------

if __name__ == "__main__":
    B, H, W = 2, 16, 16
    C, num_heads, ksize = 32, 2, 3
    N = H * W

    key = jax.random.PRNGKey(0)
    keys = jax.random.split(key, 7)

    def init(k, shape, s=0.05):
        return jax.random.normal(k, shape, jnp.float32) * s

    params = {
        "wq": init(keys[0], (C, C)),
        "bq": init(keys[1], (C,)),
        "wkv": init(keys[2], (C, 2 * C)),
        "bkv": init(keys[3], (2 * C,)),
        "wo": init(keys[4], (C, C)),
        "bo": init(keys[5], (C,)),
    }
    x = jax.random.normal(keys[6], (B, N, C), jnp.float32)

    # max_tile_tokens=128 -> TH=8, grid=(B, 2): exercises the spatial tiling.
    out = center_attention_forward(x, H, W, params, num_heads=num_heads,
                                   kernel_size=ksize, max_tile_tokens=128)
    out = jax.block_until_ready(out)

    ref = jax.block_until_ready(
        reference_forward(x, H, W, params, num_heads=num_heads,
                          kernel_size=ksize))

    assert out.shape == (B, N, C), out.shape
    assert bool(jnp.all(jnp.isfinite(out)))
    max_err = float(jnp.max(jnp.abs(out - ref)))
    # bf16 MXU inputs + approx reciprocal -> slightly looser than pure f32.
    assert max_err < 2e-2, f"mismatch vs reference: {max_err}"

    print("KERNEL_OK")
</pallas_src>

<mosaic_0001>
module attributes {stable_mosaic.version = 11 : i64} {
  func.func @_center_attention_kernel(%arg0: i32, %arg1: i32, %arg2: memref<1x1x32x162xbf16, #tpu.memory_space<vmem>>, %arg3: memref<32x32xbf16, #tpu.memory_space<vmem>>, %arg4: memref<32x1xf32, #tpu.memory_space<vmem>>, %arg5: memref<64x32xbf16, #tpu.memory_space<vmem>>, %arg6: memref<64x1xf32, #tpu.memory_space<vmem>>, %arg7: memref<32x32xbf16, #tpu.memory_space<vmem>>, %arg8: memref<32x1xf32, #tpu.memory_space<vmem>>, %arg9: memref<1x32x128xf32, #tpu.memory_space<vmem>>, %arg10: memref<64x162xf32, #tpu.memory_space<vmem>>) attributes {dimension_semantics = [#tpu.dimension_semantics<parallel>, #tpu.dimension_semantics<parallel>], iteration_bounds = array<i64: 2, 2>, scalar_prefetch = 0 : i64, scratch_operands = 1 : i64, tpu.core_type = #tpu.core_type<tc>, window_params = [{transform_indices = @transform_0, window_bounds = array<i64: 1, 1, 32, 162>}, {pipeline_mode = #tpu.pipeline_mode<synchronous>, transform_indices = @transform_1, window_bounds = array<i64: 32, 32>}, {pipeline_mode = #tpu.pipeline_mode<synchronous>, transform_indices = @transform_2, window_bounds = array<i64: 32, 1>}, {pipeline_mode = #tpu.pipeline_mode<synchronous>, transform_indices = @transform_3, window_bounds = array<i64: 64, 32>}, {pipeline_mode = #tpu.pipeline_mode<synchronous>, transform_indices = @transform_4, window_bounds = array<i64: 64, 1>}, {pipeline_mode = #tpu.pipeline_mode<synchronous>, transform_indices = @transform_5, window_bounds = array<i64: 32, 32>}, {pipeline_mode = #tpu.pipeline_mode<synchronous>, transform_indices = @transform_6, window_bounds = array<i64: 32, 1>}, {transform_indices = @transform_7, window_bounds = array<i64: 1, 32, 128>}]} {
    %c0 = arith.constant 0 : index
    %c0_0 = arith.constant 0 : index
    %0 = vector.load %arg5[%c0, %c0_0] : memref<64x32xbf16, #tpu.memory_space<vmem>>, vector<64x32xbf16>
    %c0_1 = arith.constant 0 : index
    %c0_2 = arith.constant 0 : index
    %c0_3 = arith.constant 0 : index
    %c0_4 = arith.constant 0 : index
    %1 = vector.load %arg2[%c0_1, %c0_2, %c0_3, %c0_4] : memref<1x1x32x162xbf16, #tpu.memory_space<vmem>>, vector<1x1x32x162xbf16>
    %2 = vector.shape_cast %1 : vector<1x1x32x162xbf16> to vector<32x162xbf16>
    %cst = arith.constant dense<0.000000e+00> : vector<64x162xf32>
    %3 = tpu.matmul %0, %2, %cst {dimension_numbers = #tpu.dot_dimension_numbers<[1], [0], [0], [1], [0, 0, 1, 1], [], []>} : vector<64x32xbf16>, vector<32x162xbf16>, vector<64x162xf32> -> vector<64x162xf32>
    %c128_i32 = arith.constant 128 : i32
    %4 = arith.muli %arg1, %c128_i32 : i32
    %5 = tpu.iota {dimensions = array<i32: 1>} : vector<1x162xi32>
    %6 = vector.broadcast %4 : i32 to vector<1x162xi32>
    %7 = arith.addi %6, %5 : vector<1x162xi32>
    %c17_i32 = arith.constant 17 : i32
    %8 = vector.broadcast %c17_i32 : i32 to vector<1x162xi32>
    %9 = arith.subi %7, %8 : vector<1x162xi32>
    %c0_i32 = arith.constant 0 : i32
    %10 = vector.broadcast %c0_i32 : i32 to vector<1x162xi32>
    %11 = arith.cmpi sge, %9, %10 : vector<1x162xi32>
    %c256_i32 = arith.constant 256 : i32
    %12 = vector.broadcast %c256_i32 : i32 to vector<1x162xi32>
    %13 = arith.cmpi slt, %9, %12 : vector<1x162xi32>
    %14 = arith.andi %11, %13 : vector<1x162xi1>
    %15 = arith.extui %14 : vector<1x162xi1> to vector<1x162xi32>
    %16 = arith.sitofp %15 : vector<1x162xi32> to vector<1x162xf32>
    %c0_5 = arith.constant 0 : index
    %c0_6 = arith.constant 0 : index
    %17 = vector.load %arg6[%c0_5, %c0_6] : memref<64x1xf32, #tpu.memory_space<vmem>>, vector<64x1xf32>
    %18 = vector.broadcast %17 : vector<64x1xf32> to vector<64x162xf32>
    %19 = vector.broadcast %16 : vector<1x162xf32> to vector<64x162xf32>
    %20 = arith.mulf %18, %19 : vector<64x162xf32>
    %21 = arith.addf %3, %20 : vector<64x162xf32>
    %c0_7 = arith.constant 0 : index
    %c0_8 = arith.constant 0 : index
    %22 = vector.load %arg10[%c0_7, %c0_8] : memref<64x162xf32, #tpu.memory_space<vmem>>, vector<64x162xf32>
    tpu.vector_store %arg10[%c0_7, %c0_8], %21 {strides = array<i32>} : memref<64x162xf32, #tpu.memory_space<vmem>>, vector<64x162xf32>,
    %c0_9 = arith.constant 0 : index
    %c0_10 = arith.constant 0 : index
    %c0_11 = arith.constant 0 : index
    %c17 = arith.constant 17 : index
    %23 = vector.load %arg2[%c0_9, %c0_10, %c0_11, %c17] : memref<1x1x32x162xbf16, #tpu.memory_space<vmem>>, vector<1x1x32x128xbf16>
    %24 = vector.shape_cast %23 : vector<1x1x32x128xbf16> to vector<32x128xbf16>
    %c0_12 = arith.constant 0 : index
    %c0_13 = arith.constant 0 : index
    %25 = vector.load %arg3[%c0_12, %c0_13] : memref<32x32xbf16, #tpu.memory_space<vmem>>, vector<32x32xbf16>
    %cst_14 = arith.constant dense<0.000000e+00> : vector<32x128xf32>
    %26 = tpu.matmul %25, %24, %cst_14 {dimension_numbers = #tpu.dot_dimension_numbers<[1], [0], [0], [1], [0, 0, 1, 1], [], []>} : vector<32x32xbf16>, vector<32x128xbf16>, vector<32x128xf32> -> vector<32x128xf32>
    %c0_15 = arith.constant 0 : index
    %c0_16 = arith.constant 0 : index
    %27 = vector.load %arg4[%c0_15, %c0_16] : memref<32x1xf32, #tpu.memory_space<vmem>>, vector<32x1xf32>
    %28 = vector.broadcast %27 : vector<32x1xf32> to vector<32x128xf32>
    %29 = arith.addf %26, %28 : vector<32x128xf32>
    %30 = vector.shape_cast %29 : vector<32x128xf32> to vector<2x16x128xf32>
    %31 = tpu.iota {dimensions = array<i32: 1>} : vector<1x128xi32>
    %c16_i32 = arith.constant 16 : i32
    %c0_i32_17 = arith.constant 0 : i32
    %32 = arith.cmpi eq, %c16_i32, %c0_i32_17 : i32
    %c1_i32 = arith.constant 1 : i32
    %33 = arith.select %32, %c1_i32, %c16_i32 : i32
    %34 = vector.broadcast %33 : i32 to vector<1x128xi32>
    %35 = arith.remsi %31, %34 : vector<1x128xi32>
    %c0_i32_18 = arith.constant 0 : i32
    %36 = vector.broadcast %c0_i32_18 : i32 to vector<1x128xi32>
    %37 = arith.cmpi ne, %35, %36 : vector<1x128xi32>
    %c0_i32_19 = arith.constant 0 : i32
    %38 = vector.broadcast %c0_i32_19 : i32 to vector<1x128xi32>
    %39 = arith.cmpi slt, %35, %38 : vector<1x128xi32>
    %c0_i32_20 = arith.constant 0 : i32
    %40 = arith.cmpi slt, %33, %c0_i32_20 : i32
    %41 = vector.broadcast %40 : i1 to vector<1x128xi1>
    %42 = vector.broadcast %41 : vector<1x128xi1> to vector<1x128xi1>
    %43 = arith.xori %39, %42 : vector<1x128xi1>
    %44 = arith.andi %43, %37 : vector<1x128xi1>
    %45 = vector.broadcast %33 : i32 to vector<1x128xi32>
    %46 = arith.addi %35, %45 : vector<1x128xi32>
    %47 = arith.select %44, %46, %35 : vector<1x128xi1>, vector<1x128xi32>
    %c-1_i32 = arith.constant -1 : i32
    %48 = vector.broadcast %c-1_i32 : i32 to vector<1x128xi32>
    %49 = arith.addi %47, %48 : vector<1x128xi32>
    %c0_i32_21 = arith.constant 0 : i32
    %50 = vector.broadcast %c0_i32_21 : i32 to vector<1x128xi32>
    %51 = arith.cmpi sge, %49, %50 : vector<1x128xi32>
    %c-1_i32_22 = arith.constant -1 : i32
    %52 = vector.broadcast %c-1_i32_22 : i32 to vector<1x128xi32>
    %53 = arith.addi %47, %52 : vector<1x128xi32>
    %c16_i32_23 = arith.constant 16 : i32
    %54 = vector.broadcast %c16_i32_23 : i32 to vector<1x128xi32>
    %55 = arith.cmpi slt, %53, %54 : vector<1x128xi32>
    %56 = arith.andi %51, %55 : vector<1x128xi1>
    %57 = arith.extui %56 : vector<1x128xi1> to vector<1x128xi32>
    %58 = arith.sitofp %57 : vector<1x128xi32> to vector<1x128xf32>
    %c1_i32_24 = arith.constant 1 : i32
    %59 = vector.broadcast %c1_i32_24 : i32 to vector<1x128xi32>
    %60 = arith.addi %47, %59 : vector<1x128xi32>
    %c0_i32_25 = arith.constant 0 : i32
    %61 = vector.broadcast %c0_i32_25 : i32 to vector<1x128xi32>
    %62 = arith.cmpi sge, %60, %61 : vector<1x128xi32>
    %c1_i32_26 = arith.constant 1 : i32
    %63 = vector.broadcast %c1_i32_26 : i32 to vector<1x128xi32>
    %64 = arith.addi %47, %63 : vector<1x128xi32>
    %c16_i32_27 = arith.constant 16 : i32
    %65 = vector.broadcast %c16_i32_27 : i32 to vector<1x128xi32>
    %66 = arith.cmpi slt, %64, %65 : vector<1x128xi32>
    %67 = arith.andi %62, %66 : vector<1x128xi1>
    %68 = arith.extui %67 : vector<1x128xi1> to vector<1x128xi32>
    %69 = arith.sitofp %68 : vector<1x128xi32> to vector<1x128xf32>
    %c0_28 = arith.constant 0 : index
    %c0_29 = arith.constant 0 : index
    %70 = vector.load %arg10[%c0_28, %c0_29] : memref<64x162xf32, #tpu.memory_space<vmem>>, vector<32x128xf32>
    %71 = vector.shape_cast %70 : vector<32x128xf32> to vector<2x16x128xf32>
    %72 = arith.mulf %30, %71 : vector<2x16x128xf32>
    %cst_30 = arith.constant dense<0.000000e+00> : vector<2x128xf32>
    %73 = vector.multi_reduction <add>, %72, %cst_30 [1] : vector<2x16x128xf32> to vector<2x128xf32>
    %74 = vector.broadcast %58 : vector<1x128xf32> to vector<2x128xf32>
    %75 = arith.mulf %73, %74 : vector<2x128xf32>
    %c0_31 = arith.constant 0 : index
    %c1 = arith.constant 1 : index
    %76 = vector.load %arg10[%c0_31, %c1] : memref<64x162xf32, #tpu.memory_space<vmem>>, vector<32x128xf32>
    %77 = vector.shape_cast %76 : vector<32x128xf32> to vector<2x16x128xf32>
    %78 = arith.mulf %30, %77 : vector<2x16x128xf32>
    %cst_32 = arith.constant dense<0.000000e+00> : vector<2x128xf32>
    %79 = vector.multi_reduction <add>, %78, %cst_32 [1] : vector<2x16x128xf32> to vector<2x128xf32>
    %c0_33 = arith.constant 0 : index
    %c2 = arith.constant 2 : index
    %80 = vector.load %arg10[%c0_33, %c2] : memref<64x162xf32, #tpu.memory_space<vmem>>, vector<32x128xf32>
    %81 = vector.shape_cast %80 : vector<32x128xf32> to vector<2x16x128xf32>
    %82 = arith.mulf %30, %81 : vector<2x16x128xf32>
    %cst_34 = arith.constant dense<0.000000e+00> : vector<2x128xf32>
    %83 = vector.multi_reduction <add>, %82, %cst_34 [1] : vector<2x16x128xf32> to vector<2x128xf32>
    %84 = vector.broadcast %69 : vector<1x128xf32> to vector<2x128xf32>
    %85 = arith.mulf %83, %84 : vector<2x128xf32>
    %c0_35 = arith.constant 0 : index
    %c16 = arith.constant 16 : index
    %86 = vector.load %arg10[%c0_35, %c16] : memref<64x162xf32, #tpu.memory_space<vmem>>, vector<32x128xf32>
    %87 = vector.shape_cast %86 : vector<32x128xf32> to vector<2x16x128xf32>
    %88 = arith.mulf %30, %87 : vector<2x16x128xf32>
    %cst_36 = arith.constant dense<0.000000e+00> : vector<2x128xf32>
    %89 = vector.multi_reduction <add>, %88, %cst_36 [1] : vector<2x16x128xf32> to vector<2x128xf32>
    %90 = vector.broadcast %58 : vector<1x128xf32> to vector<2x128xf32>
    %91 = arith.mulf %89, %90 : vector<2x128xf32>
    %c0_37 = arith.constant 0 : index
    %c17_38 = arith.constant 17 : index
    %92 = vector.load %arg10[%c0_37, %c17_38] : memref<64x162xf32, #tpu.memory_space<vmem>>, vector<32x128xf32>
    %93 = vector.shape_cast %92 : vector<32x128xf32> to vector<2x16x128xf32>
    %94 = arith.mulf %30, %93 : vector<2x16x128xf32>
    %cst_39 = arith.constant dense<0.000000e+00> : vector<2x128xf32>
    %95 = vector.multi_reduction <add>, %94, %cst_39 [1] : vector<2x16x128xf32> to vector<2x128xf32>
    %c0_40 = arith.constant 0 : index
    %c18 = arith.constant 18 : index
    %96 = vector.load %arg10[%c0_40, %c18] : memref<64x162xf32, #tpu.memory_space<vmem>>, vector<32x128xf32>
    %97 = vector.shape_cast %96 : vector<32x128xf32> to vector<2x16x128xf32>
    %98 = arith.mulf %30, %97 : vector<2x16x128xf32>
    %cst_41 = arith.constant dense<0.000000e+00> : vector<2x128xf32>
    %99 = vector.multi_reduction <add>, %98, %cst_41 [1] : vector<2x16x128xf32> to vector<2x128xf32>
    %100 = vector.broadcast %69 : vector<1x128xf32> to vector<2x128xf32>
    %101 = arith.mulf %99, %100 : vector<2x128xf32>
    %c0_42 = arith.constant 0 : index
    %c32 = arith.constant 32 : index
    %102 = vector.load %arg10[%c0_42, %c32] : memref<64x162xf32, #tpu.memory_space<vmem>>, vector<32x128xf32>
    %103 = vector.shape_cast %102 : vector<32x128xf32> to vector<2x16x128xf32>
    %104 = arith.mulf %30, %103 : vector<2x16x128xf32>
    %cst_43 = arith.constant dense<0.000000e+00> : vector<2x128xf32>
    %105 = vector.multi_reduction <add>, %104, %cst_43 [1] : vector<2x16x128xf32> to vector<2x128xf32>
    %106 = vector.broadcast %58 : vector<1x128xf32> to vector<2x128xf32>
    %107 = arith.mulf %105, %106 : vector<2x128xf32>
    %c0_44 = arith.constant 0 : index
    %c33 = arith.constant 33 : index
    %108 = vector.load %arg10[%c0_44, %c33] : memref<64x162xf32, #tpu.memory_space<vmem>>, vector<32x128xf32>
    %109 = vector.shape_cast %108 : vector<32x128xf32> to vector<2x16x128xf32>
    %110 = arith.mulf %30, %109 : vector<2x16x128xf32>
    %cst_45 = arith.constant dense<0.000000e+00> : vector<2x128xf32>
    %111 = vector.multi_reduction <add>, %110, %cst_45 [1] : vector<2x16x128xf32> to vector<2x128xf32>
    %c0_46 = arith.constant 0 : index
    %c34 = arith.constant 34 : index
    %112 = vector.load %arg10[%c0_46, %c34] : memref<64x162xf32, #tpu.memory_space<vmem>>, vector<32x128xf32>
    %113 = vector.shape_cast %112 : vector<32x128xf32> to vector<2x16x128xf32>
    %114 = arith.mulf %30, %113 : vector<2x16x128xf32>
    %cst_47 = arith.constant dense<0.000000e+00> : vector<2x128xf32>
    %115 = vector.multi_reduction <add>, %114, %cst_47 [1] : vector<2x16x128xf32> to vector<2x128xf32>
    %116 = vector.broadcast %69 : vector<1x128xf32> to vector<2x128xf32>
    %117 = arith.mulf %115, %116 : vector<2x128xf32>
    %118 = arith.maximumf %75, %79 : vector<2x128xf32>
    %119 = arith.maximumf %118, %85 : vector<2x128xf32>
    %120 = arith.maximumf %119, %91 : vector<2x128xf32>
    %121 = arith.maximumf %120, %95 : vector<2x128xf32>
    %122 = arith.maximumf %121, %101 : vector<2x128xf32>
    %123 = arith.maximumf %122, %107 : vector<2x128xf32>
    %124 = arith.maximumf %123, %111 : vector<2x128xf32>
    %125 = arith.maximumf %124, %117 : vector<2x128xf32>
    %126 = arith.subf %75, %125 : vector<2x128xf32>
    %127 = math.exp %126 : vector<2x128xf32>
    %128 = arith.subf %79, %125 : vector<2x128xf32>
    %129 = math.exp %128 : vector<2x128xf32>
    %130 = arith.subf %85, %125 : vector<2x128xf32>
    %131 = math.exp %130 : vector<2x128xf32>
    %132 = arith.subf %91, %125 : vector<2x128xf32>
    %133 = math.exp %132 : vector<2x128xf32>
    %134 = arith.subf %95, %125 : vector<2x128xf32>
    %135 = math.exp %134 : vector<2x128xf32>
    %136 = arith.subf %101, %125 : vector<2x128xf32>
    %137 = math.exp %136 : vector<2x128xf32>
    %138 = arith.subf %107, %125 : vector<2x128xf32>
    %139 = math.exp %138 : vector<2x128xf32>
    %140 = arith.subf %111, %125 : vector<2x128xf32>
    %141 = math.exp %140 : vector<2x128xf32>
    %142 = arith.subf %117, %125 : vector<2x128xf32>
    %143 = math.exp %142 : vector<2x128xf32>
    %144 = arith.addf %127, %129 : vector<2x128xf32>
    %145 = arith.addf %144, %131 : vector<2x128xf32>
    %146 = arith.addf %145, %133 : vector<2x128xf32>
    %147 = arith.addf %146, %135 : vector<2x128xf32>
    %148 = arith.addf %147, %137 : vector<2x128xf32>
    %149 = arith.addf %148, %139 : vector<2x128xf32>
    %150 = arith.addf %149, %141 : vector<2x128xf32>
    %151 = arith.addf %150, %143 : vector<2x128xf32>
    %152 = tpu.reciprocal %151 {approx = true} : vector<2x128xf32> -> vector<2x128xf32>
    %cst_48 = arith.constant 0.000000e+00 : f32
    %153 = vector.broadcast %cst_48 : f32 to vector<2x16x128xf32>
    %c32_49 = arith.constant 32 : index
    %c0_50 = arith.constant 0 : index
    %154 = vector.load %arg10[%c32_49, %c0_50] : memref<64x162xf32, #tpu.memory_space<vmem>>, vector<32x128xf32>
    %155 = arith.mulf %127, %152 : vector<2x128xf32>
    %156 = vector.broadcast %58 : vector<1x128xf32> to vector<2x128xf32>
    %157 = arith.mulf %155, %156 : vector<2x128xf32>
    %158 = vector.shape_cast %157 : vector<2x128xf32> to vector<2x1x128xf32>
    %159 = vector.shape_cast %154 : vector<32x128xf32> to vector<2x16x128xf32>
    %160 = vector.broadcast %158 : vector<2x1x128xf32> to vector<2x16x128xf32>
    %161 = arith.mulf %160, %159 : vector<2x16x128xf32>
    %162 = arith.addf %153, %161 : vector<2x16x128xf32>
    %c32_51 = arith.constant 32 : index
    %c1_52 = arith.constant 1 : index
    %163 = vector.load %arg10[%c32_51, %c1_52] : memref<64x162xf32, #tpu.memory_space<vmem>>, vector<32x128xf32>
    %164 = arith.mulf %129, %152 : vector<2x128xf32>
    %165 = vector.shape_cast %164 : vector<2x128xf32> to vector<2x1x128xf32>
    %166 = vector.shape_cast %163 : vector<32x128xf32> to vector<2x16x128xf32>
    %167 = vector.broadcast %165 : vector<2x1x128xf32> to vector<2x16x128xf32>
    %168 = arith.mulf %167, %166 : vector<2x16x128xf32>
    %169 = arith.addf %162, %168 : vector<2x16x128xf32>
    %c32_53 = arith.constant 32 : index
    %c2_54 = arith.constant 2 : index
    %170 = vector.load %arg10[%c32_53, %c2_54] : memref<64x162xf32, #tpu.memory_space<vmem>>, vector<32x128xf32>
    %171 = arith.mulf %131, %152 : vector<2x128xf32>
    %172 = vector.broadcast %69 : vector<1x128xf32> to vector<2x128xf32>
    %173 = arith.mulf %171, %172 : vector<2x128xf32>
    %174 = vector.shape_cast %173 : vector<2x128xf32> to vector<2x1x128xf32>
    %175 = vector.shape_cast %170 : vector<32x128xf32> to vector<2x16x128xf32>
    %176 = vector.broadcast %174 : vector<2x1x128xf32> to vector<2x16x128xf32>
    %177 = arith.mulf %176, %175 : vector<2x16x128xf32>
    %178 = arith.addf %169, %177 : vector<2x16x128xf32>
    %c32_55 = arith.constant 32 : index
    %c16_56 = arith.constant 16 : index
    %179 = vector.load %arg10[%c32_55, %c16_56] : memref<64x162xf32, #tpu.memory_space<vmem>>, vector<32x128xf32>
    %180 = arith.mulf %133, %152 : vector<2x128xf32>
    %181 = vector.broadcast %58 : vector<1x128xf32> to vector<2x128xf32>
    %182 = arith.mulf %180, %181 : vector<2x128xf32>
    %183 = vector.shape_cast %182 : vector<2x128xf32> to vector<2x1x128xf32>
    %184 = vector.shape_cast %179 : vector<32x128xf32> to vector<2x16x128xf32>
    %185 = vector.broadcast %183 : vector<2x1x128xf32> to vector<2x16x128xf32>
    %186 = arith.mulf %185, %184 : vector<2x16x128xf32>
    %187 = arith.addf %178, %186 : vector<2x16x128xf32>
    %c32_57 = arith.constant 32 : index
    %c17_58 = arith.constant 17 : index
    %188 = vector.load %arg10[%c32_57, %c17_58] : memref<64x162xf32, #tpu.memory_space<vmem>>, vector<32x128xf32>
    %189 = arith.mulf %135, %152 : vector<2x128xf32>
    %190 = vector.shape_cast %189 : vector<2x128xf32> to vector<2x1x128xf32>
    %191 = vector.shape_cast %188 : vector<32x128xf32> to vector<2x16x128xf32>
    %192 = vector.broadcast %190 : vector<2x1x128xf32> to vector<2x16x128xf32>
    %193 = arith.mulf %192, %191 : vector<2x16x128xf32>
    %194 = arith.addf %187, %193 : vector<2x16x128xf32>
    %c32_59 = arith.constant 32 : index
    %c18_60 = arith.constant 18 : index
    %195 = vector.load %arg10[%c32_59, %c18_60] : memref<64x162xf32, #tpu.memory_space<vmem>>, vector<32x128xf32>
    %196 = arith.mulf %137, %152 : vector<2x128xf32>
    %197 = vector.broadcast %69 : vector<1x128xf32> to vector<2x128xf32>
    %198 = arith.mulf %196, %197 : vector<2x128xf32>
    %199 = vector.shape_cast %198 : vector<2x128xf32> to vector<2x1x128xf32>
    %200 = vector.shape_cast %195 : vector<32x128xf32> to vector<2x16x128xf32>
    %201 = vector.broadcast %199 : vector<2x1x128xf32> to vector<2x16x128xf32>
    %202 = arith.mulf %201, %200 : vector<2x16x128xf32>
    %203 = arith.addf %194, %202 : vector<2x16x128xf32>
    %c32_61 = arith.constant 32 : index
    %c32_62 = arith.constant 32 : index
    %204 = vector.load %arg10[%c32_61, %c32_62] : memref<64x162xf32, #tpu.memory_space<vmem>>, vector<32x128xf32>
    %205 = arith.mulf %139, %152 : vector<2x128xf32>
    %206 = vector.broadcast %58 : vector<1x128xf32> to vector<2x128xf32>
    %207 = arith.mulf %205, %206 : vector<2x128xf32>
    %208 = vector.shape_cast %207 : vector<2x128xf32> to vector<2x1x128xf32>
    %209 = vector.shape_cast %204 : vector<32x128xf32> to vector<2x16x128xf32>
    %210 = vector.broadcast %208 : vector<2x1x128xf32> to vector<2x16x128xf32>
    %211 = arith.mulf %210, %209 : vector<2x16x128xf32>
    %212 = arith.addf %203, %211 : vector<2x16x128xf32>
    %c32_63 = arith.constant 32 : index
    %c33_64 = arith.constant 33 : index
    %213 = vector.load %arg10[%c32_63, %c33_64] : memref<64x162xf32, #tpu.memory_space<vmem>>, vector<32x128xf32>
    %214 = arith.mulf %141, %152 : vector<2x128xf32>
    %215 = vector.shape_cast %214 : vector<2x128xf32> to vector<2x1x128xf32>
    %216 = vector.shape_cast %213 : vector<32x128xf32> to vector<2x16x128xf32>
    %217 = vector.broadcast %215 : vector<2x1x128xf32> to vector<2x16x128xf32>
    %218 = arith.mulf %217, %216 : vector<2x16x128xf32>
    %219 = arith.addf %212, %218 : vector<2x16x128xf32>
    %c32_65 = arith.constant 32 : index
    %c34_66 = arith.constant 34 : index
    %220 = vector.load %arg10[%c32_65, %c34_66] : memref<64x162xf32, #tpu.memory_space<vmem>>, vector<32x128xf32>
    %221 = arith.mulf %143, %152 : vector<2x128xf32>
    %222 = vector.broadcast %69 : vector<1x128xf32> to vector<2x128xf32>
    %223 = arith.mulf %221, %222 : vector<2x128xf32>
    %224 = vector.shape_cast %223 : vector<2x128xf32> to vector<2x1x128xf32>
    %225 = vector.shape_cast %220 : vector<32x128xf32> to vector<2x16x128xf32>
    %226 = vector.broadcast %224 : vector<2x1x128xf32> to vector<2x16x128xf32>
    %227 = arith.mulf %226, %225 : vector<2x16x128xf32>
    %228 = arith.addf %219, %227 : vector<2x16x128xf32>
    %229 = vector.shape_cast %228 : vector<2x16x128xf32> to vector<32x128xf32>
    %c0_67 = arith.constant 0 : index
    %c0_68 = arith.constant 0 : index
    %230 = vector.load %arg7[%c0_67, %c0_68] : memref<32x32xbf16, #tpu.memory_space<vmem>>, vector<32x32xbf16>
    %231 = arith.truncf %229 : vector<32x128xf32> to vector<32x128xbf16>
    %cst_69 = arith.constant dense<0.000000e+00> : vector<32x128xf32>
    %232 = tpu.matmul %230, %231, %cst_69 {dimension_numbers = #tpu.dot_dimension_numbers<[1], [0], [0], [1], [0, 0, 1, 1], [], []>} : vector<32x32xbf16>, vector<32x128xbf16>, vector<32x128xf32> -> vector<32x128xf32>
    %c0_70 = arith.constant 0 : index
    %c0_71 = arith.constant 0 : index
    %233 = vector.load %arg8[%c0_70, %c0_71] : memref<32x1xf32, #tpu.memory_space<vmem>>, vector<32x1xf32>
    %234 = vector.broadcast %233 : vector<32x1xf32> to vector<32x128xf32>
    %235 = arith.addf %232, %234 : vector<32x128xf32>
    %c0_72 = arith.constant 0 : index
    %c0_73 = arith.constant 0 : index
    %c0_74 = arith.constant 0 : index
    %236 = vector.load %arg9[%c0_72, %c0_73, %c0_74] : memref<1x32x128xf32, #tpu.memory_space<vmem>>, vector<1x32x128xf32>
    %237 = vector.shape_cast %236 : vector<1x32x128xf32> to vector<32x128xf32>
    %238 = vector.shape_cast %235 : vector<32x128xf32> to vector<1x32x128xf32>
    tpu.vector_store %arg9[%c0_72, %c0_73, %c0_74], %238 {strides = array<i32>} : memref<1x32x128xf32, #tpu.memory_space<vmem>>, vector<1x32x128xf32>,
    return
  }
  func.func @transform_0(%arg0: i32, %arg1: i32) -> (i32, i32, i32, i32) {
    %c0_i32 = arith.constant 0 : i32
    %c0_i32_0 = arith.constant 0 : i32
    %c0_i32_1 = arith.constant 0 : i32
    return %arg0, %arg1, %c0_i32, %c0_i32_0 : i32, i32, i32, i32
  }
  func.func @transform_1(%arg0: i32, %arg1: i32) -> (i32, i32) {
    %c0_i32 = arith.constant 0 : i32
    %c0_i32_0 = arith.constant 0 : i32
    %c0_i32_1 = arith.constant 0 : i32
    return %c0_i32, %c0_i32_0 : i32, i32
  }
  func.func @transform_2(%arg0: i32, %arg1: i32) -> (i32, i32) {
    %c0_i32 = arith.constant 0 : i32
    %c0_i32_0 = arith.constant 0 : i32
    %c0_i32_1 = arith.constant 0 : i32
    return %c0_i32, %c0_i32_0 : i32, i32
  }
  func.func @transform_3(%arg0: i32, %arg1: i32) -> (i32, i32) {
    %c0_i32 = arith.constant 0 : i32
    %c0_i32_0 = arith.constant 0 : i32
    %c0_i32_1 = arith.constant 0 : i32
    return %c0_i32, %c0_i32_0 : i32, i32
  }
  func.func @transform_4(%arg0: i32, %arg1: i32) -> (i32, i32) {
    %c0_i32 = arith.constant 0 : i32
    %c0_i32_0 = arith.constant 0 : i32
    %c0_i32_1 = arith.constant 0 : i32
    return %c0_i32, %c0_i32_0 : i32, i32
  }
  func.func @transform_5(%arg0: i32, %arg1: i32) -> (i32, i32) {
    %c0_i32 = arith.constant 0 : i32
    %c0_i32_0 = arith.constant 0 : i32
    %c0_i32_1 = arith.constant 0 : i32
    return %c0_i32, %c0_i32_0 : i32, i32
  }
  func.func @transform_6(%arg0: i32, %arg1: i32) -> (i32, i32) {
    %c0_i32 = arith.constant 0 : i32
    %c0_i32_0 = arith.constant 0 : i32
    %c0_i32_1 = arith.constant 0 : i32
    return %c0_i32, %c0_i32_0 : i32, i32
  }
  func.func @transform_7(%arg0: i32, %arg1: i32) -> (i32, i32, i32) {
    %c0_i32 = arith.constant 0 : i32
    %c0_i32_0 = arith.constant 0 : i32
    return %arg0, %c0_i32, %arg1 : i32, i32, i32
  }
}

</mosaic_0001>

<llo_original>
// kernel: tpu_custom_call.1
$region0: #{tpu_custom_call.1}
  #allocation0 [shape = 'u32[]', space=smem, size = 0x4, offset = 0x4, fixed_abs, tag = 'smem constant byte address 0x4 - core index']
  #allocation1 [shape = 'u32[144,128]{1,0:T(1,128)}', space=vmem, size = 0x12000, scoped, tag = 'internal scratch']
  #allocation2 [shape = 'f32[64,162]{1,0:T(8,128)}', space=vmem, size = 0x10000, scoped, tag = 'scratch operand']
  %s0 = inlined_call_operand.vmem [shape: bf16[2,2,32,162], index: 0, kind: input, shape index: {}]
  %s1 = inlined_call_operand.vmem [shape: bf16[32,32], index: 1, kind: input, shape index: {}]
  %s2 = inlined_call_operand.vmem [shape: f32[32,1], index: 2, kind: input, shape index: {}]
  %s3 = inlined_call_operand.vmem [shape: bf16[64,32], index: 3, kind: input, shape index: {}]
  %s4 = inlined_call_operand.vmem [shape: f32[64,1], index: 4, kind: input, shape index: {}]
  %s5 = inlined_call_operand.vmem [shape: bf16[32,32], index: 5, kind: input, shape index: {}]
  %s6 = inlined_call_operand.vmem [shape: f32[32,1], index: 6, kind: input, shape index: {}]
  %s7 = inlined_call_operand.hbm [shape: f32[2,32,256], index: 7, kind: output, shape index: {}]
  %s8 = sld [smem:[#allocation0]]
  $region61: #{tpu_custom_call.1} parent=0
    _
  %s10 = ssub.s32 1, %s8
  %s11 = scalar_select 0, %s10, %s8
  $region1: #{tpu_custom_call.1} parent=0
    #allocation3 [shape = 'u8[32768]{0}', space=vmem, size = 0x8000, scoped, tag = 'output window, operand 0']
    #allocation4 [shape = 's32[2]{0}', space=sflag, size = 0x8, scoped, tag = 'scoped memory for tpu_custom_call.1']
    %12 = vsyncpa [#allocation4], 0
    %s13 = scalar_lea.sflag [#allocation4], 1
    %14 = vsyncpa %s13, 0
    loop: start=0, step=1, limit=6
    $region2: #{tpu_custom_call.1} parent=1 // loop_pre_header
      _
    $region3: #{tpu_custom_call.1} parent=1 // loop_header
      %s16 = sphi 0, %s20
      %p17 = scmp.ge.s32.totalorder %s16, 6
      %s23 = sphi 0, %s35
      %s24 = sphi 0, %s31
      %s25 = sphi 0, %s23
      %s26 = sphi 0, %s24
      %s27 = sphi 0, %s25
      %s28 = sphi 0, %s26
      %s40 = sphi 0, %s42
      %s43 = sphi 0, %s40
      %s44 = sphi 0, %s43
      %s60 = sphi 0, %s44
      %s64 = sphi 0, %s64
      %s66 = sphi 0, %s64
      %s67 = sphi 0, %s66
      %s81 = sphi 0, %s67
      %s85 = sphi 0, %s85
      %s87 = sphi 0, %s85
      %s88 = sphi 0, %s87
      %s102 = sphi 0, %s88
      %s106 = sphi 0, %s106
      %s108 = sphi 0, %s106
      %s109 = sphi 0, %s108
      %s123 = sphi 0, %s109
      %s127 = sphi 0, %s127
      %s129 = sphi 0, %s127
      %s130 = sphi 0, %s129
      %s144 = sphi 0, %s130
      %s148 = sphi 0, %s148
      %s150 = sphi 0, %s148
      %s151 = sphi 0, %s150
      %s165 = sphi 0, %s151
      %s169 = sphi 0, %s169
      %s171 = sphi 0, %s169
      %s172 = sphi 0, %s171
      %s186 = sphi 0, %s172
      %s194 = sphi 0, %s196
      %s197 = sphi 0, %s194
      %s198 = sphi 0, %s197
      %s214 = sphi 0, %s198
    $region4: #{tpu_custom_call.1} parent=1 // loop_header_branch
      %19 = sbr.rel (%p17) target = $region8
    $region5: #{tpu_custom_call.1} parent=1 // loop_body
      %s21 = ssub.s32 %s16, 1
      %s22 = ssub.s32 %s16, 2
      %s29 = sadd.s32 1, %s24
      %p30 = scmp.ge.s32.totalorder %s29, 2
      %s31 = scalar_select %p30, 0, %s29
      %s32 = sadd.s32 1, %s23
      %s33 = scalar_select %p30, %s32, %s23
      %p34 = scmp.ge.s32.totalorder %s33, 2
      %s35 = scalar_select %p34, 0, %s33
      %s36 = ssub.s32 %s23, %s35
      %s37 = ssub.s32 %s24, %s31
      %s38 = sor.u32 %s36, %s37
      %p39 = scmp.eq.s32.totalorder %s38, 0
      %s41 = sadd.s32 %s40, 1
      %s42 = scalar_select %p39, %s40, %s41
      %p45 = pneg %p39
      %p46 = scmp.eq.s32.totalorder %s16, 3
      %p47 = por %p45, %p46
      %p48 = scmp.ne.s32.totalorder %s40, %s43
      %p49 = scmp.eq.s32.totalorder %s16, 0
      %p50 = por %p48, %p49
      %p51 = scmp.ne.s32.totalorder %s40, %s43
      %p52 = scmp.eq.s32.totalorder %s21, 3
      %p53 = por %p51, %p52
      %p54 = scmp.ne.s32.totalorder %s43, %s44
      %p55 = scmp.eq.s32.totalorder %s21, 0
      %p56 = por %p54, %p55
      %p57 = scmp.ne.s32.totalorder %s43, %s44
      %p58 = scmp.eq.s32.totalorder %s22, 3
      %p59 = por %p57, %p58
      %p61 = scmp.ne.s32.totalorder %s44, %s60
      %p62 = scmp.eq.s32.totalorder %s22, 0
      %p63 = por %p61, %p62
      %s65 = sadd.s32 %s64, 1
      %p68 = scmp.eq.s32.totalorder %s16, 3
      %p69 = scmp.ne.s32.totalorder %s64, %s66
      %p70 = scmp.eq.s32.totalorder %s16, 0
      %p71 = por %p69, %p70
      %p72 = scmp.ne.s32.totalorder %s64, %s66
      %p73 = scmp.eq.s32.totalorder %s21, 3
      %p74 = por %p72, %p73
      %p75 = scmp.ne.s32.totalorder %s66, %s67
      %p76 = scmp.eq.s32.totalorder %s21, 0
      %p77 = por %p75, %p76
      %p78 = scmp.ne.s32.totalorder %s66, %s67
      %p79 = scmp.eq.s32.totalorder %s22, 3
      %p80 = por %p78, %p79
      %p82 = scmp.ne.s32.totalorder %s67, %s81
      %p83 = scmp.eq.s32.totalorder %s22, 0
      %p84 = por %p82, %p83
      %s86 = sadd.s32 %s85, 1
      %p89 = scmp.eq.s32.totalorder %s16, 3
      %p90 = scmp.ne.s32.totalorder %s85, %s87
      %p91 = scmp.eq.s32.totalorder %s16, 0
      %p92 = por %p90, %p91
      %p93 = scmp.ne.s32.totalorder %s85, %s87
      %p94 = scmp.eq.s32.totalorder %s21, 3
      %p95 = por %p93, %p94
      %p96 = scmp.ne.s32.totalorder %s87, %s88
      %p97 = scmp.eq.s32.totalorder %s21, 0
      %p98 = por %p96, %p97
      %p99 = scmp.ne.s32.totalorder %s87, %s88
      %p100 = scmp.eq.s32.totalorder %s22, 3
      %p101 = por %p99, %p100
      %p103 = scmp.ne.s32.totalorder %s88, %s102
      %p104 = scmp.eq.s32.totalorder %s22, 0
      %p105 = por %p103, %p104
      %s107 = sadd.s32 %s106, 1
      %p110 = scmp.eq.s32.totalorder %s16, 3
      %p111 = scmp.ne.s32.totalorder %s106, %s108
      %p112 = scmp.eq.s32.totalorder %s16, 0
      %p113 = por %p111, %p112
      %p114 = scmp.ne.s32.totalorder %s106, %s108
      %p115 = scmp.eq.s32.totalorder %s21, 3
      %p116 = por %p114, %p115
      %p117 = scmp.ne.s32.totalorder %s108, %s109
      %p118 = scmp.eq.s32.totalorder %s21, 0
      %p119 = por %p117, %p118
      %p120 = scmp.ne.s32.totalorder %s108, %s109
      %p121 = scmp.eq.s32.totalorder %s22, 3
      %p122 = por %p120, %p121
      %p124 = scmp.ne.s32.totalorder %s109, %s123
      %p125 = scmp.eq.s32.totalorder %s22, 0
      %p126 = por %p124, %p125
      %s128 = sadd.s32 %s127, 1
      %p131 = scmp.eq.s32.totalorder %s16, 3
      %p132 = scmp.ne.s32.totalorder %s127, %s129
      %p133 = scmp.eq.s32.totalorder %s16, 0
      %p134 = por %p132, %p133
      %p135 = scmp.ne.s32.totalorder %s127, %s129
      %p136 = scmp.eq.s32.totalorder %s21, 3
      %p137 = por %p135, %p136
      %p138 = scmp.ne.s32.totalorder %s129, %s130
      %p139 = scmp.eq.s32.totalorder %s21, 0
      %p140 = por %p138, %p139
      %p141 = scmp.ne.s32.totalorder %s129, %s130
      %p142 = scmp.eq.s32.totalorder %s22, 3
      %p143 = por %p141, %p142
      %p145 = scmp.ne.s32.totalorder %s130, %s144
      %p146 = scmp.eq.s32.totalorder %s22, 0
      %p147 = por %p145, %p146
      %s149 = sadd.s32 %s148, 1
      %p152 = scmp.eq.s32.totalorder %s16, 3
      %p153 = scmp.ne.s32.totalorder %s148, %s150
      %p154 = scmp.eq.s32.totalorder %s16, 0
      %p155 = por %p153, %p154
      %p156 = scmp.ne.s32.totalorder %s148, %s150
      %p157 = scmp.eq.s32.totalorder %s21, 3
      %p158 = por %p156, %p157
      %p159 = scmp.ne.s32.totalorder %s150, %s151
      %p160 = scmp.eq.s32.totalorder %s21, 0
      %p161 = por %p159, %p160
      %p162 = scmp.ne.s32.totalorder %s150, %s151
      %p163 = scmp.eq.s32.totalorder %s22, 3
      %p164 = por %p162, %p163
      %p166 = scmp.ne.s32.totalorder %s151, %s165
      %p167 = scmp.eq.s32.totalorder %s22, 0
      %p168 = por %p166, %p167
      %s170 = sadd.s32 %s169, 1
      %p173 = scmp.eq.s32.totalorder %s16, 3
      %p174 = scmp.ne.s32.totalorder %s169, %s171
      %p175 = scmp.eq.s32.totalorder %s16, 0
      %p176 = por %p174, %p175
      %p177 = scmp.ne.s32.totalorder %s169, %s171
      %p178 = scmp.eq.s32.totalorder %s21, 3
      %p179 = por %p177, %p178
      %p180 = scmp.ne.s32.totalorder %s171, %s172
      %p181 = scmp.eq.s32.totalorder %s21, 0
      %p182 = por %p180, %p181
      %p183 = scmp.ne.s32.totalorder %s171, %s172
      %p184 = scmp.eq.s32.totalorder %s22, 3
      %p185 = por %p183, %p184
      %p187 = scmp.ne.s32.totalorder %s172, %s186
      %p188 = scmp.eq.s32.totalorder %s22, 0
      %p189 = por %p187, %p188
      %s190 = ssub.s32 %s23, %s35
      %s191 = ssub.s32 %s24, %s31
      %s192 = sor.u32 %s190, %s191
      %p193 = scmp.eq.s32.totalorder %s192, 0
      %s195 = sadd.s32 %s194, 1
      %s196 = scalar_select %p193, %s194, %s195
      %p199 = pneg %p193
      %p200 = scmp.eq.s32.totalorder %s16, 3
      %p201 = por %p199, %p200
      %p202 = scmp.ne.s32.totalorder %s194, %s197
      %p203 = scmp.eq.s32.totalorder %s16, 0
      %p204 = por %p202, %p203
      %p205 = scmp.ne.s32.totalorder %s194, %s197
      %p206 = scmp.eq.s32.totalorder %s21, 3
      %p207 = por %p205, %p206
      %p208 = scmp.ne.s32.totalorder %s197, %s198
      %p209 = scmp.eq.s32.totalorder %s21, 0
      %p210 = por %p208, %p209
      %p211 = scmp.ne.s32.totalorder %s197, %s198
      %p212 = scmp.eq.s32.totalorder %s22, 3
      %p213 = por %p211, %p212
      %p215 = scmp.ne.s32.totalorder %s198, %s214
      %p216 = scmp.eq.s32.totalorder %s22, 0
      %p217 = por %p215, %p216
      %p218 = scmp.le.s32.totalorder 1, %s16
      %p219 = scmp.lt.s32.totalorder %s16, 5
      %p220 = pnand %p218, %p219
      %p221 = pneg %p220
      // Predicated region
      $region9: #{tpu_custom_call.1} parent=5 // pred_check
        _
      $region10: #{tpu_custom_call.1} parent=5 // pred_check_branch
        %223 = sbr.rel (%p220) target = $region12
      $region11: #{tpu_custom_call.1} parent=5 // pred_region
        %s224 = ssub.s32 %s16, 1
        // Predicated region
        $region13: #{tpu_custom_call.1} parent=11 // pred_check
          %p225 = pneg %p77
        $region14: #{tpu_custom_call.1} parent=11 // pred_check_branch
          %227 = sbr.rel (%p225) target = $region16
        $region15: #{tpu_custom_call.1} parent=11 // pred_region
          _
        $region16: #{tpu_custom_call.1} parent=11 // pred_fallthru
          _
        // Predicated region
        $region17: #{tpu_custom_call.1} parent=11 // pred_check
          %p228 = pneg %p98
        $region18: #{tpu_custom_call.1} parent=11 // pred_check_branch
          %230 = sbr.rel (%p228) target = $region20
        $region19: #{tpu_custom_call.1} parent=11 // pred_region
          _
        $region20: #{tpu_custom_call.1} parent=11 // pred_fallthru
          _
        // Predicated region
        $region21: #{tpu_custom_call.1} parent=11 // pred_check
          %p231 = pneg %p119
        $region22: #{tpu_custom_call.1} parent=11 // pred_check_branch
          %233 = sbr.rel (%p231) target = $region24
        $region23: #{tpu_custom_call.1} parent=11 // pred_region
          _
        $region24: #{tpu_custom_call.1} parent=11 // pred_fallthru
          _
        // Predicated region
        $region25: #{tpu_custom_call.1} parent=11 // pred_check
          %p234 = pneg %p140
        $region26: #{tpu_custom_call.1} parent=11 // pred_check_branch
          %236 = sbr.rel (%p234) target = $region28
        $region27: #{tpu_custom_call.1} parent=11 // pred_region
          _
        $region28: #{tpu_custom_call.1} parent=11 // pred_fallthru
          _
        // Predicated region
        $region29: #{tpu_custom_call.1} parent=11 // pred_check
          %p237 = pneg %p161
        $region30: #{tpu_custom_call.1} parent=11 // pred_check_branch
          %239 = sbr.rel (%p237) target = $region32
        $region31: #{tpu_custom_call.1} parent=11 // pred_region
          _
        $region32: #{tpu_custom_call.1} parent=11 // pred_fallthru
          _
        // Predicated region
        $region33: #{tpu_custom_call.1} parent=11 // pred_check
          %p240 = pneg %p182
        $region34: #{tpu_custom_call.1} parent=11 // pred_check_branch
          %242 = sbr.rel (%p240) target = $region36
        $region35: #{tpu_custom_call.1} parent=11 // pred_region
          _
        $region36: #{tpu_custom_call.1} parent=11 // pred_fallthru
          _
      $region12: #{tpu_custom_call.1} parent=5 // pred_fallthru
        _
      %p243 = scmp.lt.s32.totalorder %s16, 4
      // Predicated region
      $region37: #{tpu_custom_call.1} parent=5 // pred_check
        %p244 = pneg %p243
      $region38: #{tpu_custom_call.1} parent=5 // pred_check_branch
        %246 = sbr.rel (%p244) target = $region40
      $region39: #{tpu_custom_call.1} parent=5 // pred_region
        // Predicated region
        $region41: #{tpu_custom_call.1} parent=39 // pred_check
          %p247 = pneg %p50
        $region42: #{tpu_custom_call.1} parent=39 // pred_check_branch
          %249 = sbr.rel (%p247) target = $region44
        $region43: #{tpu_custom_call.1} parent=39 // pred_region
          %p250 = scmp.lt.s32.totalorder %s23, 1
          %s251 = scalar_select %p250, %s23, 1
          %p252 = scmp.lt.s32.totalorder %s24, 1
          %s253 = scalar_select %p252, %s24, 1
          %s254 = smul.addr %s253, 8
          %s255 = smul.addr %s251, 16
          %s256 = sadd.s32 %s254, %s255
          %s257 = smul.addr %s256, 4
          %s258 = scalar_lea.vmem %s0, %s257
        $region44: #{tpu_custom_call.1} parent=39 // pred_fallthru
          _
      $region40: #{tpu_custom_call.1} parent=5 // pred_fallthru
        _
      %p259 = scmp.le.s32.totalorder 1, %s16
      %p260 = scmp.lt.s32.totalorder %s16, 5
      %p261 = pnand %p259, %p260
      %p262 = pneg %p261
      // Predicated region
      $region45: #{tpu_custom_call.1} parent=5 // pred_check
        _
      $region46: #{tpu_custom_call.1} parent=5 // pred_check_branch
        %264 = sbr.rel (%p261) target = $region48
      $region47: #{tpu_custom_call.1} parent=5 // pred_region
        %s265 = ssub.s32 %s16, 1
        %p266 = scmp.lt.s32.totalorder %s25, 1
        %s267 = scalar_select %p266, %s25, 1
        %p268 = scmp.lt.s32.totalorder %s26, 1
        %s269 = scalar_select %p268, %s26, 1
        %s270 = smul.addr %s269, 8
        %s271 = smul.addr %s267, 16
        %s272 = sadd.s32 %s270, %s271
        %s273 = smul.addr %s272, 4
        %s274 = scalar_lea.vmem %s0, %s273
        %p275 = pneg %p56
        %p276 = pneg %p53
        %p277 = pneg %p77
        %p278 = pneg %p74
        %p279 = pneg %p98
        %p280 = pneg %p95
        %p281 = pneg %p119
        %p282 = pneg %p116
        %p283 = pneg %p140
        %p284 = pneg %p137
        %p285 = pneg %p161
        %p286 = pneg %p158
        %p287 = pneg %p182
        %p288 = pneg %p179
        %p289 = pneg %p210
        %p290 = pneg %p207
        %s291 = sand.u32 %s197, 1
        %s292 = scalar_lea.sflag [#allocation4], %s291
        %s293 = sand.u32 %s197, 1
        %s294 = smul.addr %s293, 32
        %s295 = scalar_lea.vmem [#allocation3], %s294
        %p296 = scmp.lt.s32.totalorder %s25, 1
        %s297 = scalar_select %p296, %s25, 1
        %p298 = scmp.lt.s32.totalorder %s26, 1
        %s299 = scalar_select %p298, %s26, 1
        %s300 = smul.addr %s299, 8
        %s301 = smul.addr %s297, 16
        %s302 = sadd.s32 %s300, %s301
        %s303 = smul.addr %s302, 4
        %s304 = scalar_lea.vmem %s0, %s303
        %v306 = vld [vmem:[%s3] sm:$0xf]
        %v307 = vld [vmem:[%s3 + $0x4] sm:$0xf]
        %v308 = vld [vmem:[%s3 + $0x8] sm:$0xf]
        %v309 = vld [vmem:[%s3 + $0xc] sm:$0xf]
        %v310 = vld [vmem:[%s3 + $0x10] sm:$0xf]
        %v311 = vld [vmem:[%s3 + $0x14] sm:$0xf]
        %v312 = vld [vmem:[%s3 + $0x18] sm:$0xf]
        %v313 = vld [vmem:[%s3 + $0x1c] sm:$0xf]
        %v314 = vld [vmem:[%s304] sm:$0xff]
        %v315 = vld [vmem:[%s304 + $0x8] sm:$0xff]
        %v316 = vld [vmem:[%s304 + $0x10] sm:$0xff]
        %v317 = vld [vmem:[%s304 + $0x18] sm:$0xff]
        %s318 = smul.u32 %s26, 128
        %v319 = vlaneseq
        %v320 = vand.u32 %v319, 127
        %v321 = vadd.s32 %v320, 128
        %v322 = vstv %s318
        %v323 = vadd.s32 %v322, %v320
        %v324 = vadd.s32 %v322, %v321
        %v325 = vsub.s32 %v323, 17
        %v326 = vsub.s32 %v324, 17
        %vm327 = vcmp.ge.s32.totalorder %v325, 0
        %vm328 = vcmp.ge.s32.totalorder %v326, 0
        %vm329 = vcmp.lt.s32.totalorder %v325, 256
        %vm330 = vcmp.lt.s32.totalorder %v326, 256
        %vm331 = vmand %vm327, %vm329
        %vm332 = vmand %vm328, %vm330
        %v333 = vsel %vm331, 1, 0
        %v334 = vsel %vm332, 1, 0
        %v335 = vcvt.s32.f32 %v333
        %v336 = vcvt.s32.f32 %v334
        %v337 = vld [vmem:[%s4] sm:$0xff]
        %v338 = vld [vmem:[%s4 + $0x8] sm:$0xff]
        %v339 = vld [vmem:[%s4 + $0x10] sm:$0xff]
        %v340 = vld [vmem:[%s4 + $0x18] sm:$0xff]
        %v341 = vld [vmem:[%s4 + $0x20] sm:$0xff]
        %v342 = vld [vmem:[%s4 + $0x28] sm:$0xff]
        %v343 = vld [vmem:[%s4 + $0x30] sm:$0xff]
        %v344 = vld [vmem:[%s4 + $0x38] sm:$0xff]
        %346 = vset.pattern.permute.xlu0 0
        %347 = vperm.xlu0 %346, %v337
        %v348 = vpop.permute.xlu0 %347
        %351 = vset.pattern.permute.xlu0 0
        %352 = vperm.xlu0 %351, %v338
        %v353 = vpop.permute.xlu0 %352
        %356 = vset.pattern.permute.xlu0 0
        %357 = vperm.xlu0 %356, %v339
        %v358 = vpop.permute.xlu0 %357
        %361 = vset.pattern.permute.xlu0 0
        %362 = vperm.xlu0 %361, %v340
        %v363 = vpop.permute.xlu0 %362
        %366 = vset.pattern.permute.xlu0 0
        %367 = vperm.xlu0 %366, %v341
        %v368 = vpop.permute.xlu0 %367
        %371 = vset.pattern.permute.xlu0 0
        %372 = vperm.xlu0 %371, %v342
        %v373 = vpop.permute.xlu0 %372
        %376 = vset.pattern.permute.xlu0 0
        %377 = vperm.xlu0 %376, %v343
        %v378 = vpop.permute.xlu0 %377
        %381 = vset.pattern.permute.xlu0 0
        %382 = vperm.xlu0 %381, %v344
        %v383 = vpop.permute.xlu0 %382
        %v385 = vmul.f32 %v348, %v335
        %v386 = vmul.f32 %v348, %v336
        %v387 = vmul.f32 %v353, %v335
        %v388 = vmul.f32 %v353, %v336
        %v389 = vmul.f32 %v358, %v335
        %v390 = vmul.f32 %v358, %v336
        %v391 = vmul.f32 %v363, %v335
        %v392 = vmul.f32 %v363, %v336
        %v393 = vmul.f32 %v368, %v335
        %v394 = vmul.f32 %v368, %v336
        %v395 = vmul.f32 %v373, %v335
        %v396 = vmul.f32 %v373, %v336
        %v397 = vmul.f32 %v378, %v335
        %v398 = vmul.f32 %v378, %v336
        %v399 = vmul.f32 %v383, %v335
        %v400 = vmul.f32 %v383, %v336
        %v409 = vunpack.c.l.b16 %v306
        %v410 = vunpack.c.l.b16 %v307
        %v411 = vunpack.c.l.b16 %v308
        %v412 = vunpack.c.l.b16 %v309
        %v413 = vunpack.c.l.b16 %v310
        %v414 = vunpack.c.l.b16 %v311
        %v415 = vunpack.c.l.b16 %v312
        %v416 = vunpack.c.l.b16 %v313
        %v417 = vpack.c.b16 %v410, %v409
        %v418 = vpack.c.b16 %v412, %v411
        %v419 = vpack.c.b16 %v414, %v413
        %v420 = vpack.c.b16 %v416, %v415
        %v425 = vunpack.c.l.b16 %v314
        %v426 = vunpack.c.h.b16 %v314
        %v427 = vunpack.c.l.b16 %v315
        %v428 = vunpack.c.h.b16 %v315
        %v429 = vunpack.c.l.b16 %v316
        %v430 = vunpack.c.h.b16 %v316
        %v431 = vunpack.c.l.b16 %v317
        %v432 = vunpack.c.h.b16 %v317
        %v433 = vpack.c.b16 %v427, %v425
        %v434 = vpack.c.b16 %v428, %v426
        %v435 = vpack.c.b16 %v431, %v429
        %v436 = vpack.c.b16 %v432, %v430
        %vm441 = vcmask 261120
        %v443 = vsel %vm441, %v417, 0
        %v446 = vsel %vm441, %v418, 0
        %v449 = vsel %vm441, %v419, 0
        %v452 = vsel %vm441, %v420, 0
        %454 = vmatprep.subr.bf16.mxu0 0
        %455 = vmatpush1.bf16.msra.mxu0 0
        %456 = vmatprep.subr.bf16.mxu0 0
        %457 = vmatpush1.bf16.msra.mxu0 0
        %458 = vmatprep.subr.bf16.mxu0 0
        %459 = vmatpush1.bf16.msra.mxu0 0
        %460 = vmatprep.subr.bf16.mxu0 0
        %461 = vmatpush1.bf16.msra.mxu0 0
        %462 = vmatprep.subr.bf16.mxu0 0
        %463 = vmatpush1.bf16.msra.mxu0 0
        %464 = vmatprep.subr.bf16.mxu0 0
        %465 = vmatpush1.bf16.msra.mxu0 0
        %466 = vmatprep.subr.bf16.mxu0 %v436
        %467 = vmatpush1.bf16.msra.mxu0 %v435
        %468 = vmatprep.subr.bf16.mxu0 %v434
        %469 = vmatpush1.bf16.msra.mxu0 %v433
        %470 = vmatprep.subr.bf16.mxu0 0
        %471 = vmatpush2.bf16.msra.mxu0 0
        %472 = vmatprep.subr.bf16.mxu0 0
        %473 = vmatpush2.bf16.msra.mxu0 0
        %474 = vmatprep.subr.bf16.mxu0 0
        %475 = vmatpush2.bf16.msra.mxu0 0
        %476 = vmatprep.subr.bf16.mxu0 0
        %477 = vmatpush2.bf16.msra.mxu0 0
        %478 = vmatprep.subr.bf16.mxu0 0
        %479 = vmatpush2.bf16.msra.mxu0 0
        %480 = vmatprep.subr.bf16.mxu0 0
        %481 = vmatpush2.bf16.msra.mxu0 0
        %482 = vmatprep.subr.bf16.mxu0 0
        %483 = vmatpush2.bf16.msra.mxu0 0
        %484 = vmatprep.subr.bf16.mxu0 0
        %485 = vmatpush2.bf16.msra.mxu0 0
        %486 = vmatprep.mubr.bf16.mxu0 0
        %487 = vmatmul.mubr.bf16.gmra.mxu0 %v443
        %v488 = vpop.f32.mrf.mxu0
        %v489 = vadd.f32 %v385, %v488
        %v490 = vpop.f32.mrf.mxu0
        %v491 = vadd.f32 %v386, %v490
        %v492 = vpop.f32.mrf.mxu0
        %v493 = vadd.f32 %v387, %v492
        %v494 = vpop.f32.mrf.mxu0
        %v495 = vadd.f32 %v388, %v494
        %496 = vmatprep.mubr.bf16.mxu0 0
        %497 = vmatmul.mubr.bf16.gmra.mxu0 %v446
        %v498 = vpop.f32.mrf.mxu0
        %v499 = vadd.f32 %v389, %v498
        %v500 = vpop.f32.mrf.mxu0
        %v501 = vadd.f32 %v390, %v500
        %v502 = vpop.f32.mrf.mxu0
        %v503 = vadd.f32 %v391, %v502
        %v504 = vpop.f32.mrf.mxu0
        %v505 = vadd.f32 %v392, %v504
        %506 = vmatprep.mubr.bf16.mxu0 0
        %507 = vmatmul.mubr.bf16.gmra.mxu0 %v449
        %v508 = vpop.f32.mrf.mxu0
        %v509 = vadd.f32 %v393, %v508
        %v510 = vpop.f32.mrf.mxu0
        %v511 = vadd.f32 %v394, %v510
        %v512 = vpop.f32.mrf.mxu0
        %v513 = vadd.f32 %v395, %v512
        %v514 = vpop.f32.mrf.mxu0
        %v515 = vadd.f32 %v396, %v514
        %516 = vmatprep.mubr.bf16.mxu0 0
        %517 = vmatmul.mubr.bf16.gmra.mxu0 %v452
        %v518 = vpop.f32.mrf.mxu0
        %v519 = vadd.f32 %v397, %v518
        %v520 = vpop.f32.mrf.mxu0
        %v521 = vadd.f32 %v398, %v520
        %v522 = vpop.f32.mrf.mxu0
        %v523 = vadd.f32 %v399, %v522
        %v524 = vpop.f32.mrf.mxu0
        %v525 = vadd.f32 %v400, %v524
        %526 = vdwg.mxu0
        %527 = vst [vmem:[#allocation2] sm:$0xff] %v489
        %vm528 = vcmask 277504
        %529 = vst.msk [vmem:[#allocation2 + $0x8] sm:$0xff] %vm528, %v491
        %530 = vst [vmem:[#allocation2 + $0x10] sm:$0xff] %v493
        %531 = vst.msk [vmem:[#allocation2 + $0x18] sm:$0xff] %vm528, %v495
        %532 = vst [vmem:[#allocation2 + $0x20] sm:$0xff] %v499
        %533 = vst.msk [vmem:[#allocation2 + $0x28] sm:$0xff] %vm528, %v501
        %534 = vst [vmem:[#allocation2 + $0x30] sm:$0xff] %v503
        %535 = vst.msk [vmem:[#allocation2 + $0x38] sm:$0xff] %vm528, %v505
        %536 = vst [vmem:[#allocation2 + $0x40] sm:$0xff] %v509
        %537 = vst.msk [vmem:[#allocation2 + $0x48] sm:$0xff] %vm528, %v511
        %538 = vst [vmem:[#allocation2 + $0x50] sm:$0xff] %v513
        %539 = vst.msk [vmem:[#allocation2 + $0x58] sm:$0xff] %vm528, %v515
        %540 = vst [vmem:[#allocation2 + $0x60] sm:$0xff] %v519
        %541 = vst.msk [vmem:[#allocation2 + $0x68] sm:$0xff] %vm528, %v521
        %542 = vst [vmem:[#allocation2 + $0x70] sm:$0xff] %v523
        %543 = vst.msk [vmem:[#allocation2 + $0x78] sm:$0xff] %vm528, %v525
        %v544 = vld [vmem:[%s304] sm:$0xff]
        %v545 = vld [vmem:[%s304 + $0x8] sm:$0xff]
        %v546 = vld [vmem:[%s304 + $0x10] sm:$0xff]
        %v547 = vld [vmem:[%s304 + $0x18] sm:$0xff]
        %v548 = vld [vmem:[%s1] sm:$0xf]
        %v549 = vld [vmem:[%s1 + $0x4] sm:$0xf]
        %v550 = vld [vmem:[%s1 + $0x8] sm:$0xf]
        %v551 = vld [vmem:[%s1 + $0xc] sm:$0xf]
        %v552 = vld [vmem:[%s2] sm:$0xff]
        %v553 = vld [vmem:[%s2 + $0x8] sm:$0xff]
        %v554 = vld [vmem:[%s2 + $0x10] sm:$0xff]
        %v555 = vld [vmem:[%s2 + $0x18] sm:$0xff]
        %557 = vset.pattern.permute.xlu0 0
        %558 = vperm.xlu0 %557, %v552
        %v559 = vpop.permute.xlu0 %558
        %562 = vset.pattern.permute.xlu0 0
        %563 = vperm.xlu0 %562, %v553
        %v564 = vpop.permute.xlu0 %563
        %567 = vset.pattern.permute.xlu0 0
        %568 = vperm.xlu0 %567, %v554
        %v569 = vpop.permute.xlu0 %568
        %572 = vset.pattern.permute.xlu0 0
        %573 = vperm.xlu0 %572, %v555
        %v574 = vpop.permute.xlu0 %573
        %v580 = vunpack.c.l.b16 %v548
        %v581 = vunpack.c.l.b16 %v549
        %v582 = vunpack.c.l.b16 %v550
        %v583 = vunpack.c.l.b16 %v551
        %v584 = vpack.c.b16 %v581, %v580
        %v585 = vpack.c.b16 %v583, %v582
        %v590 = vunpack.c.l.b16 %v544
        %v591 = vunpack.c.h.b16 %v544
        %v592 = vunpack.c.l.b16 %v545
        %v593 = vunpack.c.h.b16 %v545
        %v594 = vunpack.c.l.b16 %v546
        %v595 = vunpack.c.h.b16 %v546
        %v596 = vunpack.c.l.b16 %v547
        %v597 = vunpack.c.h.b16 %v547
        %v598 = vpack.c.b16 %v592, %v590
        %v599 = vpack.c.b16 %v593, %v591
        %v600 = vpack.c.b16 %v596, %v594
        %v601 = vpack.c.b16 %v597, %v595
        %602 = vrot.lane.b32.xlu0 %v598, 111
        %v603 = vpop.permute.xlu0 %602
        %604 = vrot.lane.b32.xlu0 %v599, 111
        %v605 = vpop.permute.xlu0 %604
        %606 = vrot.lane.b32.xlu0 %v600, 111
        %v607 = vpop.permute.xlu0 %606
        %608 = vrot.lane.b32.xlu0 %v601, 111
        %v609 = vpop.permute.xlu0 %608
        %vm610 = vcmask 908288
        %v611 = vsel %vm610, %v603, %v605
        %v612 = vsel %vm610, %v607, %v609
        %v616 = vsel %vm441, %v584, 0
        %v619 = vsel %vm441, %v585, 0
        %621 = vmatprep.subr.bf16.mxu0 0
        %622 = vmatpush1.bf16.msra.mxu0 0
        %623 = vmatprep.subr.bf16.mxu0 0
        %624 = vmatpush1.bf16.msra.mxu0 0
        %625 = vmatprep.subr.bf16.mxu0 0
        %626 = vmatpush1.bf16.msra.mxu0 0
        %627 = vmatprep.subr.bf16.mxu0 0
        %628 = vmatpush1.bf16.msra.mxu0 0
        %629 = vmatprep.subr.bf16.mxu0 0
        %630 = vmatpush1.bf16.msra.mxu0 0
        %631 = vmatprep.subr.bf16.mxu0 0
        %632 = vmatpush1.bf16.msra.mxu0 0
        %633 = vmatprep.subr.bf16.mxu0 0
        %634 = vmatpush1.bf16.msra.mxu0 %v612
        %635 = vmatprep.subr.bf16.mxu0 0
        %636 = vmatpush1.bf16.msra.mxu0 %v611
        %637 = vmatprep.subr.bf16.mxu0 0
        %638 = vmatpush2.bf16.msra.mxu0 0
        %639 = vmatprep.subr.bf16.mxu0 0
        %640 = vmatpush2.bf16.msra.mxu0 0
        %641 = vmatprep.subr.bf16.mxu0 0
        %642 = vmatpush2.bf16.msra.mxu0 0
        %643 = vmatprep.subr.bf16.mxu0 0
        %644 = vmatpush2.bf16.msra.mxu0 0
        %645 = vmatprep.subr.bf16.mxu0 0
        %646 = vmatpush2.bf16.msra.mxu0 0
        %647 = vmatprep.subr.bf16.mxu0 0
        %648 = vmatpush2.bf16.msra.mxu0 0
        %649 = vmatprep.subr.bf16.mxu0 0
        %650 = vmatpush2.bf16.msra.mxu0 0
        %651 = vmatprep.subr.bf16.mxu0 0
        %652 = vmatpush2.bf16.msra.mxu0 0
        %653 = vmatprep.mubr.bf16.mxu0 0
        %654 = vmatmul.mubr.bf16.gmra.mxu0 %v616
        %v655 = vpop.f32.mrf.mxu0
        %v656 = vadd.f32 %v559, %v655
        %v657 = vpop.f32.mrf.mxu0
        %v658 = vpop.f32.mrf.mxu0
        %v659 = vadd.f32 %v564, %v658
        %v660 = vpop.f32.mrf.mxu0
        %661 = vmatprep.mubr.bf16.mxu0 0
        %662 = vmatmul.mubr.bf16.gmra.mxu0 %v619
        %v663 = vpop.f32.mrf.mxu0
        %v664 = vadd.f32 %v569, %v663
        %v665 = vpop.f32.mrf.mxu0
        %v666 = vpop.f32.mrf.mxu0
        %v667 = vadd.f32 %v574, %v666
        %v668 = vpop.f32.mrf.mxu0
        %669 = vdwg.mxu0
        %vm670 = vcmp.lt.s32.totalorder %v320, 0
        %v671 = vsub.s32 0, %v320
        %v672 = vsel %vm670, %v671, %v320
        %v673 = vshrl.u32 %v672, 4
        %v674 = vand.u32 %v672, 15
        %v675 = vsub.s32 0, %v674
        %v676 = vsel %vm670, %v675, %v674
        %vm677 = vcmp.ne.s32.totalorder %v676, 0
        %vm678 = vcmp.lt.s32.totalorder %v676, 0
        %vm679 = vmand %vm678, %vm677
        %v680 = vadd.s32 %v676, 16
        %v681 = vsel %vm679, %v680, %v676
        %v682 = vadd.s32 %v681, 4294967295
        %vm683 = vcmp.ge.s32.totalorder %v682, 0
        %vm684 = vcmp.lt.s32.totalorder %v682, 16
        %vm685 = vmand %vm683, %vm684
        %v686 = vsel %vm685, 1, 0
        %v687 = vcvt.s32.f32 %v686
        %v688 = vadd.s32 %v681, 1
        %vm689 = vcmp.ge.s32.totalorder %v688, 0
        %vm690 = vcmp.lt.s32.totalorder %v688, 16
        %vm691 = vmand %vm689, %vm690
        %v692 = vsel %vm691, 1, 0
        %v693 = vcvt.s32.f32 %v692
        %v694 = vld [vmem:[#allocation2] sm:$0xff]
        %v695 = vld [vmem:[#allocation2 + $0x10] sm:$0xff]
        %v696 = vld [vmem:[#allocation2 + $0x20] sm:$0xff]
        %v697 = vld [vmem:[#allocation2 + $0x30] sm:$0xff]
        %v698 = vmul.f32 %v656, %v694
        %v699 = vmul.f32 %v659, %v695
        %v700 = vmul.f32 %v664, %v696
        %v701 = vmul.f32 %v667, %v697
        %v702 = vadd.f32 %v698, %v699
        %v703 = vrot.slane %v702, 4
        %v704 = vadd.f32 %v702, %v703
        %v705 = vrot.slane %v704, 2
        %v706 = vadd.f32 %v704, %v705
        %v707 = vrot.slane %v706, 1
        %v708 = vadd.f32 %v706, %v707
        %v709 = vadd.f32 %v700, %v701
        %v710 = vrot.slane %v709, 4
        %v711 = vadd.f32 %v709, %v710
        %v712 = vrot.slane %v711, 2
        %v713 = vadd.f32 %v711, %v712
        %v714 = vrot.slane %v713, 1
        %v715 = vadd.f32 %v713, %v714
        %v716 = vmul.f32 %v708, %v687
        %v717 = vmul.f32 %v715, %v687
        %v718 = vld [vmem:[#allocation2 + $0x8] sm:$0xff]
        %v719 = vld [vmem:[#allocation2 + $0x18] sm:$0xff]
        %v720 = vld [vmem:[#allocation2 + $0x28] sm:$0xff]
        %v721 = vld [vmem:[#allocation2 + $0x38] sm:$0xff]
        %730 = vrot.lane.b32.xlu0 %v694, 127
        %v731 = vpop.permute.xlu0 %730
        %732 = vrot.lane.b32.xlu0 %v718, 127
        %v733 = vpop.permute.xlu0 %732
        %734 = vrot.lane.b32.xlu0 %v695, 127
        %v735 = vpop.permute.xlu0 %734
        %736 = vrot.lane.b32.xlu0 %v719, 127
        %v737 = vpop.permute.xlu0 %736
        %738 = vrot.lane.b32.xlu0 %v696, 127
        %v739 = vpop.permute.xlu0 %738
        %740 = vrot.lane.b32.xlu0 %v720, 127
        %v741 = vpop.permute.xlu0 %740
        %742 = vrot.lane.b32.xlu0 %v697, 127
        %v743 = vpop.permute.xlu0 %742
        %744 = vrot.lane.b32.xlu0 %v721, 127
        %v745 = vpop.permute.xlu0 %744
        %vm746 = vcmask 1039360
        %v747 = vsel %vm746, %v731, %v733
        %v748 = vsel %vm746, %v735, %v737
        %v749 = vsel %vm746, %v739, %v741
        %v750 = vsel %vm746, %v743, %v745
        %v755 = vmul.f32 %v656, %v747
        %v756 = vmul.f32 %v659, %v748
        %v757 = vmul.f32 %v664, %v749
        %v758 = vmul.f32 %v667, %v750
        %v759 = vadd.f32 %v755, %v756
        %v760 = vrot.slane %v759, 4
        %v761 = vadd.f32 %v759, %v760
        %v762 = vrot.slane %v761, 2
        %v763 = vadd.f32 %v761, %v762
        %v764 = vrot.slane %v763, 1
        %v765 = vadd.f32 %v763, %v764
        %v766 = vadd.f32 %v757, %v758
        %v767 = vrot.slane %v766, 4
        %v768 = vadd.f32 %v766, %v767
        %v769 = vrot.slane %v768, 2
        %v770 = vadd.f32 %v768, %v769
        %v771 = vrot.slane %v770, 1
        %v772 = vadd.f32 %v770, %v771
        %773 = vrot.lane.b32.xlu0 %v694, 126
        %v774 = vpop.permute.xlu0 %773
        %775 = vrot.lane.b32.xlu0 %v718, 126
        %v776 = vpop.permute.xlu0 %775
        %777 = vrot.lane.b32.xlu0 %v695, 126
        %v778 = vpop.permute.xlu0 %777
        %779 = vrot.lane.b32.xlu0 %v719, 126
        %v780 = vpop.permute.xlu0 %779
        %781 = vrot.lane.b32.xlu0 %v696, 126
        %v782 = vpop.permute.xlu0 %781
        %783 = vrot.lane.b32.xlu0 %v720, 126
        %v784 = vpop.permute.xlu0 %783
        %785 = vrot.lane.b32.xlu0 %v697, 126
        %v786 = vpop.permute.xlu0 %785
        %787 = vrot.lane.b32.xlu0 %v721, 126
        %v788 = vpop.permute.xlu0 %787
        %vm789 = vcmask 1031168
        %v790 = vsel %vm789, %v774, %v776
        %v791 = vsel %vm789, %v778, %v780
        %v792 = vsel %vm789, %v782, %v784
        %v793 = vsel %vm789, %v786, %v788
        %v798 = vmul.f32 %v656, %v790
        %v799 = vmul.f32 %v659, %v791
        %v800 = vmul.f32 %v664, %v792
        %v801 = vmul.f32 %v667, %v793
        %v802 = vadd.f32 %v798, %v799
        %v803 = vrot.slane %v802, 4
        %v804 = vadd.f32 %v802, %v803
        %v805 = vrot.slane %v804, 2
        %v806 = vadd.f32 %v804, %v805
        %v807 = vrot.slane %v806, 1
        %v808 = vadd.f32 %v806, %v807
        %v809 = vadd.f32 %v800, %v801
        %v810 = vrot.slane %v809, 4
        %v811 = vadd.f32 %v809, %v810
        %v812 = vrot.slane %v811, 2
        %v813 = vadd.f32 %v811, %v812
        %v814 = vrot.slane %v813, 1
        %v815 = vadd.f32 %v813, %v814
        %v816 = vmul.f32 %v808, %v693
        %v817 = vmul.f32 %v815, %v693
        %818 = vrot.lane.b32.xlu0 %v694, 112
        %v819 = vpop.permute.xlu0 %818
        %820 = vrot.lane.b32.xlu0 %v718, 112
        %v821 = vpop.permute.xlu0 %820
        %822 = vrot.lane.b32.xlu0 %v695, 112
        %v823 = vpop.permute.xlu0 %822
        %824 = vrot.lane.b32.xlu0 %v719, 112
        %v825 = vpop.permute.xlu0 %824
        %826 = vrot.lane.b32.xlu0 %v696, 112
        %v827 = vpop.permute.xlu0 %826
        %828 = vrot.lane.b32.xlu0 %v720, 112
        %v829 = vpop.permute.xlu0 %828
        %830 = vrot.lane.b32.xlu0 %v697, 112
        %v831 = vpop.permute.xlu0 %830
        %832 = vrot.lane.b32.xlu0 %v721, 112
        %v833 = vpop.permute.xlu0 %832
        %vm834 = vcmask 916480
        %v835 = vsel %vm834, %v819, %v821
        %v836 = vsel %vm834, %v823, %v825
        %v837 = vsel %vm834, %v827, %v829
        %v838 = vsel %vm834, %v831, %v833
        %v843 = vmul.f32 %v656, %v835
        %v844 = vmul.f32 %v659, %v836
        %v845 = vmul.f32 %v664, %v837
        %v846 = vmul.f32 %v667, %v838
        %v847 = vadd.f32 %v843, %v844
        %v848 = vrot.slane %v847, 4
        %v849 = vadd.f32 %v847, %v848
        %v850 = vrot.slane %v849, 2
        %v851 = vadd.f32 %v849, %v850
        %v852 = vrot.slane %v851, 1
        %v853 = vadd.f32 %v851, %v852
        %v854 = vadd.f32 %v845, %v846
        %v855 = vrot.slane %v854, 4
        %v856 = vadd.f32 %v854, %v855
        %v857 = vrot.slane %v856, 2
        %v858 = vadd.f32 %v856, %v857
        %v859 = vrot.slane %v858, 1
        %v860 = vadd.f32 %v858, %v859
        %v861 = vmul.f32 %v853, %v687
        %v862 = vmul.f32 %v860, %v687
        %863 = vrot.lane.b32.xlu0 %v694, 111
        %v864 = vpop.permute.xlu0 %863
        %865 = vrot.lane.b32.xlu0 %v718, 111
        %v866 = vpop.permute.xlu0 %865
        %867 = vrot.lane.b32.xlu0 %v695, 111
        %v868 = vpop.permute.xlu0 %867
        %869 = vrot.lane.b32.xlu0 %v719, 111
        %v870 = vpop.permute.xlu0 %869
        %871 = vrot.lane.b32.xlu0 %v696, 111
        %v872 = vpop.permute.xlu0 %871
        %873 = vrot.lane.b32.xlu0 %v720, 111
        %v874 = vpop.permute.xlu0 %873
        %875 = vrot.lane.b32.xlu0 %v697, 111
        %v876 = vpop.permute.xlu0 %875
        %877 = vrot.lane.b32.xlu0 %v721, 111
        %v878 = vpop.permute.xlu0 %877
        %vm879 = vcmask 908288
        %v880 = vsel %vm879, %v864, %v866
        %v881 = vsel %vm879, %v868, %v870
        %v882 = vsel %vm879, %v872, %v874
        %v883 = vsel %vm879, %v876, %v878
        %v888 = vmul.f32 %v656, %v880
        %v889 = vmul.f32 %v659, %v881
        %v890 = vmul.f32 %v664, %v882
        %v891 = vmul.f32 %v667, %v883
        %v892 = vadd.f32 %v888, %v889
        %v893 = vrot.slane %v892, 4
        %v894 = vadd.f32 %v892, %v893
        %v895 = vrot.slane %v894, 2
        %v896 = vadd.f32 %v894, %v895
        %v897 = vrot.slane %v896, 1
        %v898 = vadd.f32 %v896, %v897
        %v899 = vadd.f32 %v890, %v891
        %v900 = vrot.slane %v899, 4
        %v901 = vadd.f32 %v899, %v900
        %v902 = vrot.slane %v901, 2
        %v903 = vadd.f32 %v901, %v902
        %v904 = vrot.slane %v903, 1
        %v905 = vadd.f32 %v903, %v904
        %906 = vrot.lane.b32.xlu0 %v694, 110
        %v907 = vpop.permute.xlu0 %906
        %908 = vrot.lane.b32.xlu0 %v718, 110
        %v909 = vpop.permute.xlu0 %908
        %910 = vrot.lane.b32.xlu0 %v695, 110
        %v911 = vpop.permute.xlu0 %910
        %912 = vrot.lane.b32.xlu0 %v719, 110
        %v913 = vpop.permute.xlu0 %912
        %914 = vrot.lane.b32.xlu0 %v696, 110
        %v915 = vpop.permute.xlu0 %914
        %916 = vrot.lane.b32.xlu0 %v720, 110
        %v917 = vpop.permute.xlu0 %916
        %918 = vrot.lane.b32.xlu0 %v697, 110
        %v919 = vpop.permute.xlu0 %918
        %920 = vrot.lane.b32.xlu0 %v721, 110
        %v921 = vpop.permute.xlu0 %920
        %vm922 = vcmask 900096
        %v923 = vsel %vm922, %v907, %v909
        %v924 = vsel %vm922, %v911, %v913
        %v925 = vsel %vm922, %v915, %v917
        %v926 = vsel %vm922, %v919, %v921
        %v931 = vmul.f32 %v656, %v923
        %v932 = vmul.f32 %v659, %v924
        %v933 = vmul.f32 %v664, %v925
        %v934 = vmul.f32 %v667, %v926
        %v935 = vadd.f32 %v931, %v932
        %v936 = vrot.slane %v935, 4
        %v937 = vadd.f32 %v935, %v936
        %v938 = vrot.slane %v937, 2
        %v939 = vadd.f32 %v937, %v938
        %v940 = vrot.slane %v939, 1
        %v941 = vadd.f32 %v939, %v940
        %v942 = vadd.f32 %v933, %v934
        %v943 = vrot.slane %v942, 4
        %v944 = vadd.f32 %v942, %v943
        %v945 = vrot.slane %v944, 2
        %v946 = vadd.f32 %v944, %v945
        %v947 = vrot.slane %v946, 1
        %v948 = vadd.f32 %v946, %v947
        %v949 = vmul.f32 %v941, %v693
        %v950 = vmul.f32 %v948, %v693
        %951 = vrot.lane.b32.xlu0 %v694, 96
        %v952 = vpop.permute.xlu0 %951
        %953 = vrot.lane.b32.xlu0 %v718, 96
        %v954 = vpop.permute.xlu0 %953
        %955 = vrot.lane.b32.xlu0 %v695, 96
        %v956 = vpop.permute.xlu0 %955
        %957 = vrot.lane.b32.xlu0 %v719, 96
        %v958 = vpop.permute.xlu0 %957
        %959 = vrot.lane.b32.xlu0 %v696, 96
        %v960 = vpop.permute.xlu0 %959
        %961 = vrot.lane.b32.xlu0 %v720, 96
        %v962 = vpop.permute.xlu0 %961
        %963 = vrot.lane.b32.xlu0 %v697, 96
        %v964 = vpop.permute.xlu0 %963
        %965 = vrot.lane.b32.xlu0 %v721, 96
        %v966 = vpop.permute.xlu0 %965
        %vm967 = vcmask 785408
        %v968 = vsel %vm967, %v952, %v954
        %v969 = vsel %vm967, %v956, %v958
        %v970 = vsel %vm967, %v960, %v962
        %v971 = vsel %vm967, %v964, %v966
        %v976 = vmul.f32 %v656, %v968
        %v977 = vmul.f32 %v659, %v969
        %v978 = vmul.f32 %v664, %v970
        %v979 = vmul.f32 %v667, %v971
        %v980 = vadd.f32 %v976, %v977
        %v981 = vrot.slane %v980, 4
        %v982 = vadd.f32 %v980, %v981
        %v983 = vrot.slane %v982, 2
        %v984 = vadd.f32 %v982, %v983
        %v985 = vrot.slane %v984, 1
        %v986 = vadd.f32 %v984, %v985
        %v987 = vadd.f32 %v978, %v979
        %v988 = vrot.slane %v987, 4
        %v989 = vadd.f32 %v987, %v988
        %v990 = vrot.slane %v989, 2
        %v991 = vadd.f32 %v989, %v990
        %v992 = vrot.slane %v991, 1
        %v993 = vadd.f32 %v991, %v992
        %v994 = vmul.f32 %v986, %v687
        %v995 = vmul.f32 %v993, %v687
        %996 = vrot.lane.b32.xlu0 %v694, 95
        %v997 = vpop.permute.xlu0 %996
        %998 = vrot.lane.b32.xlu0 %v718, 95
        %v999 = vpop.permute.xlu0 %998
        %1000 = vrot.lane.b32.xlu0 %v695, 95
        %v1001 = vpop.permute.xlu0 %1000
        %1002 = vrot.lane.b32.xlu0 %v719, 95
        %v1003 = vpop.permute.xlu0 %1002
        %1004 = vrot.lane.b32.xlu0 %v696, 95
        %v1005 = vpop.permute.xlu0 %1004
        %1006 = vrot.lane.b32.xlu0 %v720, 95
        %v1007 = vpop.permute.xlu0 %1006
        %1008 = vrot.lane.b32.xlu0 %v697, 95
        %v1009 = vpop.permute.xlu0 %1008
        %1010 = vrot.lane.b32.xlu0 %v721, 95
        %v1011 = vpop.permute.xlu0 %1010
        %vm1012 = vcmask 777216
        %v1013 = vsel %vm1012, %v997, %v999
        %v1014 = vsel %vm1012, %v1001, %v1003
        %v1015 = vsel %vm1012, %v1005, %v1007
        %v1016 = vsel %vm1012, %v1009, %v1011
        %v1021 = vmul.f32 %v656, %v1013
        %v1022 = vmul.f32 %v659, %v1014
        %v1023 = vmul.f32 %v664, %v1015
        %v1024 = vmul.f32 %v667, %v1016
        %v1025 = vadd.f32 %v1021, %v1022
        %v1026 = vrot.slane %v1025, 4
        %v1027 = vadd.f32 %v1025, %v1026
        %v1028 = vrot.slane %v1027, 2
        %v1029 = vadd.f32 %v1027, %v1028
        %v1030 = vrot.slane %v1029, 1
        %v1031 = vadd.f32 %v1029, %v1030
        %v1032 = vadd.f32 %v1023, %v1024
        %v1033 = vrot.slane %v1032, 4
        %v1034 = vadd.f32 %v1032, %v1033
        %v1035 = vrot.slane %v1034, 2
        %v1036 = vadd.f32 %v1034, %v1035
        %v1037 = vrot.slane %v1036, 1
        %v1038 = vadd.f32 %v1036, %v1037
        %1039 = vrot.lane.b32.xlu0 %v694, 94
        %v1040 = vpop.permute.xlu0 %1039
        %1041 = vrot.lane.b32.xlu0 %v718, 94
        %v1042 = vpop.permute.xlu0 %1041
        %1043 = vrot.lane.b32.xlu0 %v695, 94
        %v1044 = vpop.permute.xlu0 %1043
        %1045 = vrot.lane.b32.xlu0 %v719, 94
        %v1046 = vpop.permute.xlu0 %1045
        %1047 = vrot.lane.b32.xlu0 %v696, 94
        %v1048 = vpop.permute.xlu0 %1047
        %1049 = vrot.lane.b32.xlu0 %v720, 94
        %v1050 = vpop.permute.xlu0 %1049
        %1051 = vrot.lane.b32.xlu0 %v697, 94
        %v1052 = vpop.permute.xlu0 %1051
        %1053 = vrot.lane.b32.xlu0 %v721, 94
        %v1054 = vpop.permute.xlu0 %1053
        %vm1055 = vcmask 769024
        %v1056 = vsel %vm1055, %v1040, %v1042
        %v1057 = vsel %vm1055, %v1044, %v1046
        %v1058 = vsel %vm1055, %v1048, %v1050
        %v1059 = vsel %vm1055, %v1052, %v1054
        %v1064 = vmul.f32 %v656, %v1056
        %v1065 = vmul.f32 %v659, %v1057
        %v1066 = vmul.f32 %v664, %v1058
        %v1067 = vmul.f32 %v667, %v1059
        %v1068 = vadd.f32 %v1064, %v1065
        %v1069 = vrot.slane %v1068, 4
        %v1070 = vadd.f32 %v1068, %v1069
        %v1071 = vrot.slane %v1070, 2
        %v1072 = vadd.f32 %v1070, %v1071
        %v1073 = vrot.slane %v1072, 1
        %v1074 = vadd.f32 %v1072, %v1073
        %v1075 = vadd.f32 %v1066, %v1067
        %v1076 = vrot.slane %v1075, 4
        %v1077 = vadd.f32 %v1075, %v1076
        %v1078 = vrot.slane %v1077, 2
        %v1079 = vadd.f32 %v1077, %v1078
        %v1080 = vrot.slane %v1079, 1
        %v1081 = vadd.f32 %v1079, %v1080
        %v1082 = vmul.f32 %v1074, %v693
        %v1083 = vmul.f32 %v1081, %v693
        %v1084 = vmax.f32 %v716, %v765
        %v1085 = vmax.f32 %v717, %v772
        %v1086 = vmax.f32 %v1084, %v816
        %v1087 = vmax.f32 %v1085, %v817
        %v1088 = vmax.f32 %v1086, %v861
        %v1089 = vmax.f32 %v1087, %v862
        %v1090 = vmax.f32 %v1088, %v898
        %v1091 = vmax.f32 %v1089, %v905
        %v1092 = vmax.f32 %v1090, %v949
        %v1093 = vmax.f32 %v1091, %v950
        %v1094 = vmax.f32 %v1092, %v994
        %v1095 = vmax.f32 %v1093, %v995
        %v1096 = vmax.f32 %v1094, %v1031
        %v1097 = vmax.f32 %v1095, %v1038
        %v1098 = vmax.f32 %v1096, %v1082
        %v1099 = vmax.f32 %v1097, %v1083
        %v1100 = vsub.f32 %v716, %v1098
        %v1101 = vsub.f32 %v717, %v1099
        %v1102 = vmul.f32 %v1100, 1.442695
        %v1103 = vpow.pop %v1102
        %v1104 = vmul.f32 %v1101, 1.442695
        %v1105 = vpow.pop %v1104
        %v1106 = vsub.f32 %v765, %v1098
        %v1107 = vsub.f32 %v772, %v1099
        %v1108 = vmul.f32 %v1106, 1.442695
        %v1109 = vpow.pop %v1108
        %v1110 = vmul.f32 %v1107, 1.442695
        %v1111 = vpow.pop %v1110
        %v1112 = vsub.f32 %v816, %v1098
        %v1113 = vsub.f32 %v817, %v1099
        %v1114 = vmul.f32 %v1112, 1.442695
        %v1115 = vpow.pop %v1114
        %v1116 = vmul.f32 %v1113, 1.442695
        %v1117 = vpow.pop %v1116
        %v1118 = vsub.f32 %v861, %v1098
        %v1119 = vsub.f32 %v862, %v1099
        %v1120 = vmul.f32 %v1118, 1.442695
        %v1121 = vpow.pop %v1120
        %v1122 = vmul.f32 %v1119, 1.442695
        %v1123 = vpow.pop %v1122
        %v1124 = vsub.f32 %v898, %v1098
        %v1125 = vsub.f32 %v905, %v1099
        %v1126 = vmul.f32 %v1124, 1.442695
        %v1127 = vpow.pop %v1126
        %v1128 = vmul.f32 %v1125, 1.442695
        %v1129 = vpow.pop %v1128
        %v1130 = vsub.f32 %v949, %v1098
        %v1131 = vsub.f32 %v950, %v1099
        %v1132 = vmul.f32 %v1130, 1.442695
        %v1133 = vpow.pop %v1132
        %v1134 = vmul.f32 %v1131, 1.442695
        %v1135 = vpow.pop %v1134
        %v1136 = vsub.f32 %v994, %v1098
        %v1137 = vsub.f32 %v995, %v1099
        %v1138 = vmul.f32 %v1136, 1.442695
        %v1139 = vpow.pop %v1138
        %v1140 = vmul.f32 %v1137, 1.442695
        %v1141 = vpow.pop %v1140
        %v1142 = vsub.f32 %v1031, %v1098
        %v1143 = vsub.f32 %v1038, %v1099
        %v1144 = vmul.f32 %v1142, 1.442695
        %v1145 = vpow.pop %v1144
        %v1146 = vmul.f32 %v1143, 1.442695
        %v1147 = vpow.pop %v1146
        %v1148 = vsub.f32 %v1082, %v1098
        %v1149 = vsub.f32 %v1083, %v1099
        %v1150 = vmul.f32 %v1148, 1.442695
        %v1151 = vpow.pop %v1150
        %v1152 = vmul.f32 %v1149, 1.442695
        %v1153 = vpow.pop %v1152
        %v1154 = vadd.f32 %v1103, %v1109
        %v1155 = vadd.f32 %v1105, %v1111
        %v1156 = vadd.f32 %v1154, %v1115
        %v1157 = vadd.f32 %v1155, %v1117
        %v1158 = vadd.f32 %v1156, %v1121
        %v1159 = vadd.f32 %v1157, %v1123
        %v1160 = vadd.f32 %v1158, %v1127
        %v1161 = vadd.f32 %v1159, %v1129
        %v1162 = vadd.f32 %v1160, %v1133
        %v1163 = vadd.f32 %v1161, %v1135
        %v1164 = vadd.f32 %v1162, %v1139
        %v1165 = vadd.f32 %v1163, %v1141
        %v1166 = vadd.f32 %v1164, %v1145
        %v1167 = vadd.f32 %v1165, %v1147
        %v1168 = vadd.f32 %v1166, %v1151
        %v1169 = vadd.f32 %v1167, %v1153
        %v1170 = vrcp.pop %v1168
        %v1171 = vrcp.pop %v1169
        %v1172 = vld [vmem:[#allocation2 + $0x40] sm:$0xff]
        %v1173 = vld [vmem:[#allocation2 + $0x50] sm:$0xff]
        %v1174 = vld [vmem:[#allocation2 + $0x60] sm:$0xff]
        %v1175 = vld [vmem:[#allocation2 + $0x70] sm:$0xff]
        %v1176 = vmul.f32 %v1103, %v1170
        %v1177 = vmul.f32 %v1105, %v1171
        %v1178 = vmul.f32 %v1176, %v687
        %v1179 = vmul.f32 %v1177, %v687
        %v1180 = vlaneseq
        %v1181 = vshrl.u32 %v1180, 7
        %v1182 = vsub.s32 0, %v1181
        %v1183 = vrot.slane %v1178, %v1182
        %v1184 = vlaneseq
        %v1185 = vshrl.u32 %v1184, 7
        %v1186 = vsub.s32 0, %v1185
        %v1187 = vrot.slane %v1179, %v1186
        %v1188 = vmul.f32 %v1183, %v1172
        %v1189 = vmul.f32 %v1183, %v1173
        %v1190 = vmul.f32 %v1187, %v1174
        %v1191 = vmul.f32 %v1187, %v1175
        %v1192 = vadd.f32 %v1188, 0.0
        %v1193 = vadd.f32 %v1189, 0.0
        %v1194 = vadd.f32 %v1190, 0.0
        %v1195 = vadd.f32 %v1191, 0.0
        %v1196 = vld [vmem:[#allocation2 + $0x48] sm:$0xff]
        %v1197 = vld [vmem:[#allocation2 + $0x58] sm:$0xff]
        %v1198 = vld [vmem:[#allocation2 + $0x68] sm:$0xff]
        %v1199 = vld [vmem:[#allocation2 + $0x78] sm:$0xff]
        %v1200 = vmul.f32 %v1109, %v1170
        %v1201 = vmul.f32 %v1111, %v1171
        %v1202 = vlaneseq
        %v1203 = vshrl.u32 %v1202, 7
        %v1204 = vsub.s32 0, %v1203
        %v1205 = vrot.slane %v1200, %v1204
        %v1206 = vlaneseq
        %v1207 = vshrl.u32 %v1206, 7
        %v1208 = vsub.s32 0, %v1207
        %v1209 = vrot.slane %v1201, %v1208
        %1218 = vrot.lane.b32.xlu0 %v1172, 127
        %v1219 = vpop.permute.xlu0 %1218
        %1220 = vrot.lane.b32.xlu0 %v1196, 127
        %v1221 = vpop.permute.xlu0 %1220
        %1222 = vrot.lane.b32.xlu0 %v1173, 127
        %v1223 = vpop.permute.xlu0 %1222
        %1224 = vrot.lane.b32.xlu0 %v1197, 127
        %v1225 = vpop.permute.xlu0 %1224
        %1226 = vrot.lane.b32.xlu0 %v1174, 127
        %v1227 = vpop.permute.xlu0 %1226
        %1228 = vrot.lane.b32.xlu0 %v1198, 127
        %v1229 = vpop.permute.xlu0 %1228
        %1230 = vrot.lane.b32.xlu0 %v1175, 127
        %v1231 = vpop.permute.xlu0 %1230
        %1232 = vrot.lane.b32.xlu0 %v1199, 127
        %v1233 = vpop.permute.xlu0 %1232
        %v1234 = vsel %vm746, %v1219, %v1221
        %v1235 = vsel %vm746, %v1223, %v1225
        %v1236 = vsel %vm746, %v1227, %v1229
        %v1237 = vsel %vm746, %v1231, %v1233
        %v1242 = vmul.f32 %v1205, %v1234
        %v1243 = vmul.f32 %v1205, %v1235
        %v1244 = vmul.f32 %v1209, %v1236
        %v1245 = vmul.f32 %v1209, %v1237
        %v1246 = vadd.f32 %v1192, %v1242
        %v1247 = vadd.f32 %v1193, %v1243
        %v1248 = vadd.f32 %v1194, %v1244
        %v1249 = vadd.f32 %v1195, %v1245
        %v1250 = vmul.f32 %v1115, %v1170
        %v1251 = vmul.f32 %v1117, %v1171
        %v1252 = vmul.f32 %v1250, %v693
        %v1253 = vmul.f32 %v1251, %v693
        %v1254 = vlaneseq
        %v1255 = vshrl.u32 %v1254, 7
        %v1256 = vsub.s32 0, %v1255
        %v1257 = vrot.slane %v1252, %v1256
        %v1258 = vlaneseq
        %v1259 = vshrl.u32 %v1258, 7
        %v1260 = vsub.s32 0, %v1259
        %v1261 = vrot.slane %v1253, %v1260
        %1262 = vrot.lane.b32.xlu0 %v1172, 126
        %v1263 = vpop.permute.xlu0 %1262
        %1264 = vrot.lane.b32.xlu0 %v1196, 126
        %v1265 = vpop.permute.xlu0 %1264
        %1266 = vrot.lane.b32.xlu0 %v1173, 126
        %v1267 = vpop.permute.xlu0 %1266
        %1268 = vrot.lane.b32.xlu0 %v1197, 126
        %v1269 = vpop.permute.xlu0 %1268
        %1270 = vrot.lane.b32.xlu0 %v1174, 126
        %v1271 = vpop.permute.xlu0 %1270
        %1272 = vrot.lane.b32.xlu0 %v1198, 126
        %v1273 = vpop.permute.xlu0 %1272
        %1274 = vrot.lane.b32.xlu0 %v1175, 126
        %v1275 = vpop.permute.xlu0 %1274
        %1276 = vrot.lane.b32.xlu0 %v1199, 126
        %v1277 = vpop.permute.xlu0 %1276
        %v1278 = vsel %vm789, %v1263, %v1265
        %v1279 = vsel %vm789, %v1267, %v1269
        %v1280 = vsel %vm789, %v1271, %v1273
        %v1281 = vsel %vm789, %v1275, %v1277
        %v1286 = vmul.f32 %v1257, %v1278
        %v1287 = vmul.f32 %v1257, %v1279
        %v1288 = vmul.f32 %v1261, %v1280
        %v1289 = vmul.f32 %v1261, %v1281
        %v1290 = vadd.f32 %v1246, %v1286
        %v1291 = vadd.f32 %v1247, %v1287
        %v1292 = vadd.f32 %v1248, %v1288
        %v1293 = vadd.f32 %v1249, %v1289
        %v1294 = vmul.f32 %v1121, %v1170
        %v1295 = vmul.f32 %v1123, %v1171
        %v1296 = vmul.f32 %v1294, %v687
        %v1297 = vmul.f32 %v1295, %v687
        %v1298 = vlaneseq
        %v1299 = vshrl.u32 %v1298, 7
        %v1300 = vsub.s32 0, %v1299
        %v1301 = vrot.slane %v1296, %v1300
        %v1302 = vlaneseq
        %v1303 = vshrl.u32 %v1302, 7
        %v1304 = vsub.s32 0, %v1303
        %v1305 = vrot.slane %v1297, %v1304
        %1306 = vrot.lane.b32.xlu0 %v1172, 112
        %v1307 = vpop.permute.xlu0 %1306
        %1308 = vrot.lane.b32.xlu0 %v1196, 112
        %v1309 = vpop.permute.xlu0 %1308
        %1310 = vrot.lane.b32.xlu0 %v1173, 112
        %v1311 = vpop.permute.xlu0 %1310
        %1312 = vrot.lane.b32.xlu0 %v1197, 112
        %v1313 = vpop.permute.xlu0 %1312
        %1314 = vrot.lane.b32.xlu0 %v1174, 112
        %v1315 = vpop.permute.xlu0 %1314
        %1316 = vrot.lane.b32.xlu0 %v1198, 112
        %v1317 = vpop.permute.xlu0 %1316
        %1318 = vrot.lane.b32.xlu0 %v1175, 112
        %v1319 = vpop.permute.xlu0 %1318
        %1320 = vrot.lane.b32.xlu0 %v1199, 112
        %v1321 = vpop.permute.xlu0 %1320
        %v1322 = vsel %vm834, %v1307, %v1309
        %v1323 = vsel %vm834, %v1311, %v1313
        %v1324 = vsel %vm834, %v1315, %v1317
        %v1325 = vsel %vm834, %v1319, %v1321
        %v1330 = vmul.f32 %v1301, %v1322
        %v1331 = vmul.f32 %v1301, %v1323
        %v1332 = vmul.f32 %v1305, %v1324
        %v1333 = vmul.f32 %v1305, %v1325
        %v1334 = vadd.f32 %v1290, %v1330
        %v1335 = vadd.f32 %v1291, %v1331
        %v1336 = vadd.f32 %v1292, %v1332
        %v1337 = vadd.f32 %v1293, %v1333
        %v1338 = vmul.f32 %v1127, %v1170
        %v1339 = vmul.f32 %v1129, %v1171
        %v1340 = vlaneseq
        %v1341 = vshrl.u32 %v1340, 7
        %v1342 = vsub.s32 0, %v1341
        %v1343 = vrot.slane %v1338, %v1342
        %v1344 = vlaneseq
        %v1345 = vshrl.u32 %v1344, 7
        %v1346 = vsub.s32 0, %v1345
        %v1347 = vrot.slane %v1339, %v1346
        %1348 = vrot.lane.b32.xlu0 %v1172, 111
        %v1349 = vpop.permute.xlu0 %1348
        %1350 = vrot.lane.b32.xlu0 %v1196, 111
        %v1351 = vpop.permute.xlu0 %1350
        %1352 = vrot.lane.b32.xlu0 %v1173, 111
        %v1353 = vpop.permute.xlu0 %1352
        %1354 = vrot.lane.b32.xlu0 %v1197, 111
        %v1355 = vpop.permute.xlu0 %1354
        %1356 = vrot.lane.b32.xlu0 %v1174, 111
        %v1357 = vpop.permute.xlu0 %1356
        %1358 = vrot.lane.b32.xlu0 %v1198, 111
        %v1359 = vpop.permute.xlu0 %1358
        %1360 = vrot.lane.b32.xlu0 %v1175, 111
        %v1361 = vpop.permute.xlu0 %1360
        %1362 = vrot.lane.b32.xlu0 %v1199, 111
        %v1363 = vpop.permute.xlu0 %1362
        %v1364 = vsel %vm879, %v1349, %v1351
        %v1365 = vsel %vm879, %v1353, %v1355
        %v1366 = vsel %vm879, %v1357, %v1359
        %v1367 = vsel %vm879, %v1361, %v1363
        %v1372 = vmul.f32 %v1343, %v1364
        %v1373 = vmul.f32 %v1343, %v1365
        %v1374 = vmul.f32 %v1347, %v1366
        %v1375 = vmul.f32 %v1347, %v1367
        %v1376 = vadd.f32 %v1334, %v1372
        %v1377 = vadd.f32 %v1335, %v1373
        %v1378 = vadd.f32 %v1336, %v1374
        %v1379 = vadd.f32 %v1337, %v1375
        %v1380 = vmul.f32 %v1133, %v1170
        %v1381 = vmul.f32 %v1135, %v1171
        %v1382 = vmul.f32 %v1380, %v693
        %v1383 = vmul.f32 %v1381, %v693
        %v1384 = vlaneseq
        %v1385 = vshrl.u32 %v1384, 7
        %v1386 = vsub.s32 0, %v1385
        %v1387 = vrot.slane %v1382, %v1386
        %v1388 = vlaneseq
        %v1389 = vshrl.u32 %v1388, 7
        %v1390 = vsub.s32 0, %v1389
        %v1391 = vrot.slane %v1383, %v1390
        %1392 = vrot.lane.b32.xlu0 %v1172, 110
        %v1393 = vpop.permute.xlu0 %1392
        %1394 = vrot.lane.b32.xlu0 %v1196, 110
        %v1395 = vpop.permute.xlu0 %1394
        %1396 = vrot.lane.b32.xlu0 %v1173, 110
        %v1397 = vpop.permute.xlu0 %1396
        %1398 = vrot.lane.b32.xlu0 %v1197, 110
        %v1399 = vpop.permute.xlu0 %1398
        %1400 = vrot.lane.b32.xlu0 %v1174, 110
        %v1401 = vpop.permute.xlu0 %1400
        %1402 = vrot.lane.b32.xlu0 %v1198, 110
        %v1403 = vpop.permute.xlu0 %1402
        %1404 = vrot.lane.b32.xlu0 %v1175, 110
        %v1405 = vpop.permute.xlu0 %1404
        %1406 = vrot.lane.b32.xlu0 %v1199, 110
        %v1407 = vpop.permute.xlu0 %1406
        %v1408 = vsel %vm922, %v1393, %v1395
        %v1409 = vsel %vm922, %v1397, %v1399
        %v1410 = vsel %vm922, %v1401, %v1403
        %v1411 = vsel %vm922, %v1405, %v1407
        %v1416 = vmul.f32 %v1387, %v1408
        %v1417 = vmul.f32 %v1387, %v1409
        %v1418 = vmul.f32 %v1391, %v1410
        %v1419 = vmul.f32 %v1391, %v1411
        %v1420 = vadd.f32 %v1376, %v1416
        %v1421 = vadd.f32 %v1377, %v1417
        %v1422 = vadd.f32 %v1378, %v1418
        %v1423 = vadd.f32 %v1379, %v1419
        %v1424 = vmul.f32 %v1139, %v1170
        %v1425 = vmul.f32 %v1141, %v1171
        %v1426 = vmul.f32 %v1424, %v687
        %v1427 = vmul.f32 %v1425, %v687
        %v1428 = vlaneseq
        %v1429 = vshrl.u32 %v1428, 7
        %v1430 = vsub.s32 0, %v1429
        %v1431 = vrot.slane %v1426, %v1430
        %v1432 = vlaneseq
        %v1433 = vshrl.u32 %v1432, 7
        %v1434 = vsub.s32 0, %v1433
        %v1435 = vrot.slane %v1427, %v1434
        %1436 = vrot.lane.b32.xlu0 %v1172, 96
        %v1437 = vpop.permute.xlu0 %1436
        %1438 = vrot.lane.b32.xlu0 %v1196, 96
        %v1439 = vpop.permute.xlu0 %1438
        %1440 = vrot.lane.b32.xlu0 %v1173, 96
        %v1441 = vpop.permute.xlu0 %1440
        %1442 = vrot.lane.b32.xlu0 %v1197, 96
        %v1443 = vpop.permute.xlu0 %1442
        %1444 = vrot.lane.b32.xlu0 %v1174, 96
        %v1445 = vpop.permute.xlu0 %1444
        %1446 = vrot.lane.b32.xlu0 %v1198, 96
        %v1447 = vpop.permute.xlu0 %1446
        %1448 = vrot.lane.b32.xlu0 %v1175, 96
        %v1449 = vpop.permute.xlu0 %1448
        %1450 = vrot.lane.b32.xlu0 %v1199, 96
        %v1451 = vpop.permute.xlu0 %1450
        %v1452 = vsel %vm967, %v1437, %v1439
        %v1453 = vsel %vm967, %v1441, %v1443
        %v1454 = vsel %vm967, %v1445, %v1447
        %v1455 = vsel %vm967, %v1449, %v1451
        %v1460 = vmul.f32 %v1431, %v1452
        %v1461 = vmul.f32 %v1431, %v1453
        %v1462 = vmul.f32 %v1435, %v1454
        %v1463 = vmul.f32 %v1435, %v1455
        %v1464 = vadd.f32 %v1420, %v1460
        %v1465 = vadd.f32 %v1421, %v1461
        %v1466 = vadd.f32 %v1422, %v1462
        %v1467 = vadd.f32 %v1423, %v1463
        %v1468 = vmul.f32 %v1145, %v1170
        %v1469 = vmul.f32 %v1147, %v1171
        %v1470 = vlaneseq
        %v1471 = vshrl.u32 %v1470, 7
        %v1472 = vsub.s32 0, %v1471
        %v1473 = vrot.slane %v1468, %v1472
        %v1474 = vlaneseq
        %v1475 = vshrl.u32 %v1474, 7
        %v1476 = vsub.s32 0, %v1475
        %v1477 = vrot.slane %v1469, %v1476
        %1478 = vrot.lane.b32.xlu0 %v1172, 95
        %v1479 = vpop.permute.xlu0 %1478
        %1480 = vrot.lane.b32.xlu0 %v1196, 95
        %v1481 = vpop.permute.xlu0 %1480
        %1482 = vrot.lane.b32.xlu0 %v1173, 95
        %v1483 = vpop.permute.xlu0 %1482
        %1484 = vrot.lane.b32.xlu0 %v1197, 95
        %v1485 = vpop.permute.xlu0 %1484
        %1486 = vrot.lane.b32.xlu0 %v1174, 95
        %v1487 = vpop.permute.xlu0 %1486
        %1488 = vrot.lane.b32.xlu0 %v1198, 95
        %v1489 = vpop.permute.xlu0 %1488
        %1490 = vrot.lane.b32.xlu0 %v1175, 95
        %v1491 = vpop.permute.xlu0 %1490
        %1492 = vrot.lane.b32.xlu0 %v1199, 95
        %v1493 = vpop.permute.xlu0 %1492
        %v1494 = vsel %vm1012, %v1479, %v1481
        %v1495 = vsel %vm1012, %v1483, %v1485
        %v1496 = vsel %vm1012, %v1487, %v1489
        %v1497 = vsel %vm1012, %v1491, %v1493
        %v1502 = vmul.f32 %v1473, %v1494
        %v1503 = vmul.f32 %v1473, %v1495
        %v1504 = vmul.f32 %v1477, %v1496
        %v1505 = vmul.f32 %v1477, %v1497
        %v1506 = vadd.f32 %v1464, %v1502
        %v1507 = vadd.f32 %v1465, %v1503
        %v1508 = vadd.f32 %v1466, %v1504
        %v1509 = vadd.f32 %v1467, %v1505
        %v1510 = vmul.f32 %v1151, %v1170
        %v1511 = vmul.f32 %v1153, %v1171
        %v1512 = vmul.f32 %v1510, %v693
        %v1513 = vmul.f32 %v1511, %v693
        %v1514 = vlaneseq
        %v1515 = vshrl.u32 %v1514, 7
        %v1516 = vsub.s32 0, %v1515
        %v1517 = vrot.slane %v1512, %v1516
        %v1518 = vlaneseq
        %v1519 = vshrl.u32 %v1518, 7
        %v1520 = vsub.s32 0, %v1519
        %v1521 = vrot.slane %v1513, %v1520
        %1522 = vrot.lane.b32.xlu0 %v1172, 94
        %v1523 = vpop.permute.xlu0 %1522
        %1524 = vrot.lane.b32.xlu0 %v1196, 94
        %v1525 = vpop.permute.xlu0 %1524
        %1526 = vrot.lane.b32.xlu0 %v1173, 94
        %v1527 = vpop.permute.xlu0 %1526
        %1528 = vrot.lane.b32.xlu0 %v1197, 94
        %v1529 = vpop.permute.xlu0 %1528
        %1530 = vrot.lane.b32.xlu0 %v1174, 94
        %v1531 = vpop.permute.xlu0 %1530
        %1532 = vrot.lane.b32.xlu0 %v1198, 94
        %v1533 = vpop.permute.xlu0 %1532
        %1534 = vrot.lane.b32.xlu0 %v1175, 94
        %v1535 = vpop.permute.xlu0 %1534
        %1536 = vrot.lane.b32.xlu0 %v1199, 94
        %v1537 = vpop.permute.xlu0 %1536
        %v1538 = vsel %vm1055, %v1523, %v1525
        %v1539 = vsel %vm1055, %v1527, %v1529
        %v1540 = vsel %vm1055, %v1531, %v1533
        %v1541 = vsel %vm1055, %v1535, %v1537
        %v1546 = vmul.f32 %v1517, %v1538
        %v1547 = vmul.f32 %v1517, %v1539
        %v1548 = vmul.f32 %v1521, %v1540
        %v1549 = vmul.f32 %v1521, %v1541
        %v1550 = vadd.f32 %v1506, %v1546
        %v1551 = vadd.f32 %v1507, %v1547
        %v1552 = vadd.f32 %v1508, %v1548
        %v1553 = vadd.f32 %v1509, %v1549
        %v1554 = vld [vmem:[%s5] sm:$0xf]
        %v1555 = vld [vmem:[%s5 + $0x4] sm:$0xf]
        %v1556 = vld [vmem:[%s5 + $0x8] sm:$0xf]
        %v1557 = vld [vmem:[%s5 + $0xc] sm:$0xf]
        %v1558 = vpack.c.bf16 %v1551, %v1550
        %v1559 = vpack.c.bf16 %v1553, %v1552
        %v1560 = vld [vmem:[%s6] sm:$0xff]
        %v1561 = vld [vmem:[%s6 + $0x8] sm:$0xff]
        %v1562 = vld [vmem:[%s6 + $0x10] sm:$0xff]
        %v1563 = vld [vmem:[%s6 + $0x18] sm:$0xff]
        %1565 = vset.pattern.permute.xlu0 0
        %1566 = vperm.xlu0 %1565, %v1560
        %v1567 = vpop.permute.xlu0 %1566
        %1570 = vset.pattern.permute.xlu0 0
        %1571 = vperm.xlu0 %1570, %v1561
        %v1572 = vpop.permute.xlu0 %1571
        %1575 = vset.pattern.permute.xlu0 0
        %1576 = vperm.xlu0 %1575, %v1562
        %v1577 = vpop.permute.xlu0 %1576
        %1580 = vset.pattern.permute.xlu0 0
        %1581 = vperm.xlu0 %1580, %v1563
        %v1582 = vpop.permute.xlu0 %1581
        %v1588 = vunpack.c.l.b16 %v1554
        %v1589 = vunpack.c.l.b16 %v1555
        %v1590 = vunpack.c.l.b16 %v1556
        %v1591 = vunpack.c.l.b16 %v1557
        %v1592 = vpack.c.b16 %v1589, %v1588
        %v1593 = vpack.c.b16 %v1591, %v1590
        %v1595 = vsel %vm441, %v1592, 0
        %v1598 = vsel %vm441, %v1593, 0
        %1600 = vmatprep.subr.bf16.mxu0 0
        %1601 = vmatpush1.bf16.msra.mxu0 0
        %1602 = vmatprep.subr.bf16.mxu0 0
        %1603 = vmatpush1.bf16.msra.mxu0 0
        %1604 = vmatprep.subr.bf16.mxu0 0
        %1605 = vmatpush1.bf16.msra.mxu0 0
        %1606 = vmatprep.subr.bf16.mxu0 0
        %1607 = vmatpush1.bf16.msra.mxu0 0
        %1608 = vmatprep.subr.bf16.mxu0 0
        %1609 = vmatpush1.bf16.msra.mxu0 0
        %1610 = vmatprep.subr.bf16.mxu0 0
        %1611 = vmatpush1.bf16.msra.mxu0 0
        %1612 = vmatprep.subr.bf16.mxu0 0
        %1613 = vmatpush1.bf16.msra.mxu0 %v1559
        %1614 = vmatprep.subr.bf16.mxu0 0
        %1615 = vmatpush1.bf16.msra.mxu0 %v1558
        %1616 = vmatprep.subr.bf16.mxu0 0
        %1617 = vmatpush2.bf16.msra.mxu0 0
        %1618 = vmatprep.subr.bf16.mxu0 0
        %1619 = vmatpush2.bf16.msra.mxu0 0
        %1620 = vmatprep.subr.bf16.mxu0 0
        %1621 = vmatpush2.bf16.msra.mxu0 0
        %1622 = vmatprep.subr.bf16.mxu0 0
        %1623 = vmatpush2.bf16.msra.mxu0 0
        %1624 = vmatprep.subr.bf16.mxu0 0
        %1625 = vmatpush2.bf16.msra.mxu0 0
        %1626 = vmatprep.subr.bf16.mxu0 0
        %1627 = vmatpush2.bf16.msra.mxu0 0
        %1628 = vmatprep.subr.bf16.mxu0 0
        %1629 = vmatpush2.bf16.msra.mxu0 0
        %1630 = vmatprep.subr.bf16.mxu0 0
        %1631 = vmatpush2.bf16.msra.mxu0 0
        %1632 = vmatprep.mubr.bf16.mxu0 0
        %1633 = vmatmul.mubr.bf16.gmra.mxu0 %v1595
        %v1634 = vpop.f32.mrf.mxu0
        %v1635 = vadd.f32 %v1567, %v1634
        %v1636 = vpop.f32.mrf.mxu0
        %v1637 = vpop.f32.mrf.mxu0
        %v1638 = vadd.f32 %v1572, %v1637
        %v1639 = vpop.f32.mrf.mxu0
        %1640 = vmatprep.mubr.bf16.mxu0 0
        %1641 = vmatmul.mubr.bf16.gmra.mxu0 %v1598
        %v1642 = vpop.f32.mrf.mxu0
        %v1643 = vadd.f32 %v1577, %v1642
        %v1644 = vpop.f32.mrf.mxu0
        %v1645 = vpop.f32.mrf.mxu0
        %v1646 = vadd.f32 %v1582, %v1645
        %v1647 = vpop.f32.mrf.mxu0
        %1648 = vdwg.mxu0
        %1649 = vst [vmem:[%s295] sm:$0xff] %v1635
        %1650 = vst [vmem:[%s295 + $0x8] sm:$0xff] %v1638
        %1651 = vst [vmem:[%s295 + $0x10] sm:$0xff] %v1643
        %1652 = vst [vmem:[%s295 + $0x18] sm:$0xff] %v1646
        %s1653 = sand.u32 %s197, 1
        %s1654 = scalar_lea.sflag [#allocation4], %s1653
        %s1655 = sand.u32 %s197, 1
        %s1656 = smul.addr %s1655, 32
        %s1657 = scalar_lea.vmem [#allocation3], %s1656
        // Predicated region
        $region49: #{tpu_custom_call.1} parent=47 // pred_check
          %p1658 = pneg %p207
        $region50: #{tpu_custom_call.1} parent=47 // pred_check_branch
          %1660 = sbr.rel (%p1658) target = $region52
        $region51: #{tpu_custom_call.1} parent=47 // pred_region
          %s1662 = ssub.s32 512, 512
          %1663 = vsyncadd %s1654, %s1662
          %s1664 = smul.addr %s25, 8
          %s1665 = sadd.s32 %s26, %s1664
          %s1666 = smul.addr %s1665, 128
          %s1667 = scalar_lea.hbm %s7, %s1666
          %s1668 = sshll.u32 %s1657, 4
          %s1669 = int_to_ptr.vmem [resolvable:$true] %s1668
          %1674 = dma.vmem_to_hbm [thread:$0]  %s1669, 512, %s1667, %s1654, 128, 256, 8
        $region52: #{tpu_custom_call.1} parent=47 // pred_fallthru
          _
      $region48: #{tpu_custom_call.1} parent=5 // pred_fallthru
        _
      %p1675 = scmp.le.s32.totalorder 2, %s16
      // Predicated region
      $region53: #{tpu_custom_call.1} parent=5 // pred_check
        %p1676 = pneg %p1675
      $region54: #{tpu_custom_call.1} parent=5 // pred_check_branch
        %1678 = sbr.rel (%p1676) target = $region56
      $region55: #{tpu_custom_call.1} parent=5 // pred_region
        %s1679 = ssub.s32 %s16, 2
        // Predicated region
        $region57: #{tpu_custom_call.1} parent=55 // pred_check
          %p1680 = pneg %p213
        $region58: #{tpu_custom_call.1} parent=55 // pred_check_branch
          %1682 = sbr.rel (%p1680) target = $region60
        $region59: #{tpu_custom_call.1} parent=55 // pred_region
          %s1683 = sand.u32 %s198, 1
          %s1684 = scalar_lea.sflag [#allocation4], %s1683
          %s1685 = sand.u32 %s198, 1
          %s1686 = smul.addr %s1685, 32
          %s1687 = scalar_lea.vmem [#allocation3], %s1686
          %1688 = dma.done %s1684, 512
        $region60: #{tpu_custom_call.1} parent=55 // pred_fallthru
          _
      $region56: #{tpu_custom_call.1} parent=5 // pred_fallthru
        _
    $region6: #{tpu_custom_call.1} parent=1 // loop_footer
      %s20 = sadd.s32 1, %s16
    $region7: #{tpu_custom_call.1} parent=1 // loop_footer_branch
      %15 = sbr.rel target = $region3
    $region8: #{tpu_custom_call.1} parent=1 // loop_exit
      _
    %1689 = vsyncpa [#allocation4], 1
    %s1690 = scalar_lea.sflag [#allocation4], 1
    %1691 = vsyncpa %s1690, 1

</llo_original>
